<compile_context>
chip_gen: v5e
topology: v5e:2x2
jax: 0.10.0
libtpu: 0.0.40
codegen_flags: <defaults>
</compile_context>

<pallas_src>
import functools

import jax
import jax.numpy as jnp
from jax.experimental import pallas as pl
from jax.experimental.pallas import tpu as pltpu

PREFIX_LEN = 5


# ----------------------------------------------------------------------------
# Fused kernel: prefix mapping + token-embedding gather -> inputs_embeds
# ----------------------------------------------------------------------------
def _fused_kernel(prefix_len, n_tok,
                  ids_ref,      # scalar prefetch: (B*n_tok,) int32 in SMEM
                  x_ref,        # (B, D)    f32  VMEM
                  w_ref,        # (D, O)    bf16 VMEM
                  b_ref,        # (1, O)    f32  VMEM
                  table_hbm,    # (V, E)    f32  HBM (pl.ANY, never fully loaded)
                  out_ref,      # (B, L, E) f32  VMEM
                  cap_buf,      # (B, n_tok, E) f32 VMEM scratch
                  sem):         # DMA semaphores, (B*n_tok,)
    B = x_ref.shape[0]
    E = out_ref.shape[2]

    def _row_copy(b, t):
        tok = ids_ref[b * n_tok + t]          # dynamic row index from SMEM
        return pltpu.make_async_copy(
            table_hbm.at[pl.ds(tok, 1), :],   # (1, E) row in HBM
            cap_buf.at[b, pl.ds(t, 1), :],    # (1, E) slot in VMEM scratch
            sem.at[b * n_tok + t])

    # 1) issue all embedding-row gather DMAs (overlap with the MXU work below).
    for b in range(B):
        for t in range(n_tok):
            _row_copy(b, t).start()

    # 2) prefix mapping on the MXU: tanh(x @ W + b), bf16 operands / f32 acc.
    acc = jnp.dot(x_ref[...].astype(jnp.bfloat16), w_ref[...],
                  preferred_element_type=jnp.float32)          # (B, O) f32
    pref = jnp.tanh(acc + b_ref[...])                          # (B, O) f32
    for p in range(prefix_len):                                # static unroll
        out_ref[:, p, :] = pref[:, p * E:(p + 1) * E]

    # 3) wait for the gathers, then write the caption block in one dense store.
    for b in range(B):
        for t in range(n_tok):
            _row_copy(b, t).wait()
    out_ref[:, prefix_len:prefix_len + n_tok, :] = cap_buf[...]


def fused_inputs_embeds(image_embed, map_w_bf16, map_b, embed_table,
                        caption_input, *, prefix_len):
    """Build inputs_embeds = concat([tanh(x@W+b).view(B,P,E), wte(ids)], 1)."""
    B, D = image_embed.shape
    n_tok = caption_input.shape[1]
    V, E = embed_table.shape
    O = map_w_bf16.shape[1]
    assert O == prefix_len * E
    L = prefix_len + n_tok

    ids_flat = caption_input.reshape(-1).astype(jnp.int32)     # SMEM prefetch

    kernel = functools.partial(_fused_kernel, prefix_len, n_tok)
    return pl.pallas_call(
        kernel,
        out_shape=jax.ShapeDtypeStruct((B, L, E), jnp.float32),
        grid_spec=pltpu.PrefetchScalarGridSpec(
            num_scalar_prefetch=1,
            grid=(1,),
            in_specs=[
                pl.BlockSpec((B, D), lambda i, ids: (0, 0)),
                pl.BlockSpec((D, O), lambda i, ids: (0, 0)),
                pl.BlockSpec((1, O), lambda i, ids: (0, 0)),
                pl.BlockSpec(memory_space=pl.ANY),   # table stays in HBM
            ],
            out_specs=pl.BlockSpec((B, L, E), lambda i, ids: (0, 0, 0)),
            scratch_shapes=[
                pltpu.VMEM((B, n_tok, E), jnp.float32),
                pltpu.SemaphoreType.DMA((B * n_tok,)),
            ],
        ),
    )(ids_flat, image_embed, map_w_bf16, map_b, embed_table)


# ----------------------------------------------------------------------------
# Model wrapper (parameters initialized deterministically in-script)
# ----------------------------------------------------------------------------
class ImageCaptioningModelPallas:
    def __init__(self, key, *, image_dim=256, embed_dim=128, vocab_size=64,
                 prefix_len=PREFIX_LEN):
        self.image_dim = image_dim
        self.embed_dim = embed_dim
        self.prefix_len = prefix_len
        self.vocab_size = vocab_size
        # tokenizer.pad_token = tokenizer.eos_token ; bos == eos for distilgpt2
        self.bos_token_id = vocab_size - 1
        self.eos_token_id = vocab_size - 1

        k_w, k_b, k_e = jax.random.split(key, 3)
        out_dim = embed_dim * prefix_len
        # nn.Linear(image_dim, embed_dim*prefix_len): weight stored transposed,
        # kept in bf16 (native MXU input dtype on v5e/v6e/v7x).
        self.map_w = (jax.random.normal(k_w, (image_dim, out_dim), jnp.float32)
                      * (1.0 / jnp.sqrt(image_dim))).astype(jnp.bfloat16)
        self.map_b = jax.random.normal(k_b, (1, out_dim), jnp.float32) * 0.01
        # wte-style token embedding table (stays in HBM; kernel gathers rows).
        self.embed_table = (jax.random.normal(k_e, (vocab_size, embed_dim),
                                              jnp.float32) * 0.02)

    def forward(self, image_embed, caption_ids, captions_attention_mask):
        B = image_embed.shape[0]

        bos = jnp.full((B, 1), self.bos_token_id, dtype=jnp.int32)
        eos = jnp.full((B, 1), self.eos_token_id, dtype=jnp.int32)
        caption_input = jnp.concatenate(
            [bos, caption_ids.astype(jnp.int32), eos], axis=1)

        # Single fused Pallas kernel: prefix mapping + embedding gather + splice.
        inputs_embeds = fused_inputs_embeds(
            image_embed, self.map_w, self.map_b, self.embed_table,
            caption_input, prefix_len=self.prefix_len)

        # Trivial int/fill bookkeeping stays in XLA (per perf review).
        ignore = jnp.full((B, self.prefix_len + 1), -100, dtype=jnp.int32)
        labels = jnp.concatenate(
            [ignore, caption_ids.astype(jnp.int32), eos], axis=1)

        attention_mask = jnp.concatenate(
            [jnp.ones((B, self.prefix_len + 1), jnp.float32),
             captions_attention_mask.astype(jnp.float32),
             jnp.ones((B, 1), jnp.float32)], axis=1)

        # TODO(synk): self.lm(inputs_embeds=..., attention_mask=..., labels=...)
        # is a pretrained GPT2/Qwen(+LoRA) checkpoint with no clean Pallas
        # equivalent; we return the exact tensors the module would hand to it.
        return {
            "inputs_embeds": inputs_embeds,
            "labels": labels,
            "attention_mask": attention_mask,
        }


# ----------------------------------------------------------------------------
if __name__ == "__main__":
    key = jax.random.PRNGKey(0)
    k_params, k_img, k_ids = jax.random.split(key, 3)

    B, IMG_DIM, EMB_DIM, VOCAB, SEQ = 2, 256, 128, 64, 8

    model = ImageCaptioningModelPallas(
        k_params, image_dim=IMG_DIM, embed_dim=EMB_DIM, vocab_size=VOCAB)

    image_embed = jax.random.normal(k_img, (B, IMG_DIM), jnp.float32)
    caption_ids = jax.random.randint(k_ids, (B, SEQ), 0, VOCAB, jnp.int32)
    captions_attention_mask = jnp.ones((B, SEQ), jnp.float32)

    out = model.forward(image_embed, caption_ids, captions_attention_mask)
    out = jax.tree_util.tree_map(jax.block_until_ready, out)

    # --- correctness check against a plain-JAX reference -------------------
    prefix_ref = jnp.tanh(
        jnp.dot(image_embed.astype(jnp.bfloat16), model.map_w,
                preferred_element_type=jnp.float32) + model.map_b)
    prefix_ref = prefix_ref.reshape(B, PREFIX_LEN, EMB_DIM)
    bos = jnp.full((B, 1), model.bos_token_id, jnp.int32)
    eos = jnp.full((B, 1), model.eos_token_id, jnp.int32)
    cap_in = jnp.concatenate([bos, caption_ids, eos], axis=1)
    cap_emb_ref = model.embed_table[cap_in]
    inputs_embeds_ref = jnp.concatenate([prefix_ref, cap_emb_ref], axis=1)

    L_total = PREFIX_LEN + SEQ + 2
    assert out["inputs_embeds"].shape == (B, L_total, EMB_DIM)
    assert out["labels"].shape == (B, L_total)
    assert out["attention_mask"].shape == (B, L_total)
    assert jnp.allclose(out["inputs_embeds"], inputs_embeds_ref,
                        atol=1e-3, rtol=1e-3), \
        "inputs_embeds mismatch vs reference"
    assert jnp.allclose(out["inputs_embeds"][:, PREFIX_LEN:, :], cap_emb_ref,
                        atol=0.0), "caption embedding gather mismatch"

    print("KERNEL_OK")
</pallas_src>

<mosaic_0001>
module attributes {stable_mosaic.version = 11 : i64} {
  func.func @_fused_kernel(%arg0: i32, %arg1: memref<20xi32, #tpu.memory_space<smem>>, %arg2: memref<2x256xf32, #tpu.memory_space<vmem>>, %arg3: memref<256x640xbf16, #tpu.memory_space<vmem>>, %arg4: memref<1x640xf32, #tpu.memory_space<vmem>>, %arg5: memref<64x128xf32, #tpu.memory_space<any>>, %arg6: memref<2x15x128xf32, #tpu.memory_space<vmem>>, %arg7: memref<2x10x128xf32, #tpu.memory_space<vmem>>, %arg8: memref<20x!tpu.dma_semaphore, #tpu.memory_space<semaphore_mem>>) attributes {dimension_semantics = [#tpu.dimension_semantics<arbitrary>], iteration_bounds = array<i64: 1>, scalar_prefetch = 1 : i64, scratch_operands = 2 : i64, tpu.core_type = #tpu.core_type<tc>, window_params = [{pipeline_mode = #tpu.pipeline_mode<synchronous>, transform_indices = @transform_0, window_bounds = array<i64: 2, 256>}, {pipeline_mode = #tpu.pipeline_mode<synchronous>, transform_indices = @transform_1, window_bounds = array<i64: 256, 640>}, {pipeline_mode = #tpu.pipeline_mode<synchronous>, transform_indices = @transform_2, window_bounds = array<i64: 1, 640>}, {}, {pipeline_mode = #tpu.pipeline_mode<synchronous>, transform_indices = @transform_4, window_bounds = array<i64: 2, 15, 128>}]} {
    %c0 = arith.constant 0 : index
    %0 = memref.load %arg1[%c0] : memref<20xi32, #tpu.memory_space<smem>>
    %c0_i32 = arith.constant 0 : i32
    %c0_i32_0 = arith.constant 0 : i32
    %c0_i32_1 = arith.constant 0 : i32
    %1 = tpu.memref_slice %arg5[%0, %c0_i32_1] : memref<64x128xf32, #tpu.memory_space<any>> -> memref<1x128xf32, #tpu.memory_space<any>>
    %c0_i32_2 = arith.constant 0 : i32
    %c0_i32_3 = arith.constant 0 : i32
    %2 = tpu.memref_slice %arg7[%c0_i32, %c0_i32_2, %c0_i32_3] : memref<2x10x128xf32, #tpu.memory_space<vmem>> -> memref<1x1x128xf32, #tpu.memory_space<vmem>>
    %3 = tpu.memref_squeeze %2 : memref<1x1x128xf32, #tpu.memory_space<vmem>> -> memref<1x128xf32, #tpu.memory_space<vmem>>
    %4 = tpu.memref_slice %arg8[%c0_i32_0] : memref<20x!tpu.dma_semaphore, #tpu.memory_space<semaphore_mem>> -> memref<1x!tpu.dma_semaphore, #tpu.memory_space<semaphore_mem>>
    %5 = tpu.memref_squeeze %4 : memref<1x!tpu.dma_semaphore, #tpu.memory_space<semaphore_mem>> -> memref<!tpu.dma_semaphore, #tpu.memory_space<semaphore_mem>>
    tpu.enqueue_dma source(%1 : memref<1x128xf32, #tpu.memory_space<any>>) target(%3 : memref<1x128xf32, #tpu.memory_space<vmem>>) target_semaphore(%5 : memref<!tpu.dma_semaphore, #tpu.memory_space<semaphore_mem>>)
    %c1 = arith.constant 1 : index
    %6 = memref.load %arg1[%c1] : memref<20xi32, #tpu.memory_space<smem>>
    %c0_i32_4 = arith.constant 0 : i32
    %c1_i32 = arith.constant 1 : i32
    %c0_i32_5 = arith.constant 0 : i32
    %7 = tpu.memref_slice %arg5[%6, %c0_i32_5] : memref<64x128xf32, #tpu.memory_space<any>> -> memref<1x128xf32, #tpu.memory_space<any>>
    %c1_i32_6 = arith.constant 1 : i32
    %c0_i32_7 = arith.constant 0 : i32
    %8 = tpu.memref_slice %arg7[%c0_i32_4, %c1_i32_6, %c0_i32_7] : memref<2x10x128xf32, #tpu.memory_space<vmem>> -> memref<1x1x128xf32, #tpu.memory_space<vmem>>
    %9 = tpu.memref_squeeze %8 : memref<1x1x128xf32, #tpu.memory_space<vmem>> -> memref<1x128xf32, #tpu.memory_space<vmem>>
    %10 = tpu.memref_slice %arg8[%c1_i32] : memref<20x!tpu.dma_semaphore, #tpu.memory_space<semaphore_mem>> -> memref<1x!tpu.dma_semaphore, #tpu.memory_space<semaphore_mem>>
    %11 = tpu.memref_squeeze %10 : memref<1x!tpu.dma_semaphore, #tpu.memory_space<semaphore_mem>> -> memref<!tpu.dma_semaphore, #tpu.memory_space<semaphore_mem>>
    tpu.enqueue_dma source(%7 : memref<1x128xf32, #tpu.memory_space<any>>) target(%9 : memref<1x128xf32, #tpu.memory_space<vmem>>) target_semaphore(%11 : memref<!tpu.dma_semaphore, #tpu.memory_space<semaphore_mem>>)
    %c2 = arith.constant 2 : index
    %12 = memref.load %arg1[%c2] : memref<20xi32, #tpu.memory_space<smem>>
    %c0_i32_8 = arith.constant 0 : i32
    %c2_i32 = arith.constant 2 : i32
    %c0_i32_9 = arith.constant 0 : i32
    %13 = tpu.memref_slice %arg5[%12, %c0_i32_9] : memref<64x128xf32, #tpu.memory_space<any>> -> memref<1x128xf32, #tpu.memory_space<any>>
    %c2_i32_10 = arith.constant 2 : i32
    %c0_i32_11 = arith.constant 0 : i32
    %14 = tpu.memref_slice %arg7[%c0_i32_8, %c2_i32_10, %c0_i32_11] : memref<2x10x128xf32, #tpu.memory_space<vmem>> -> memref<1x1x128xf32, #tpu.memory_space<vmem>>
    %15 = tpu.memref_squeeze %14 : memref<1x1x128xf32, #tpu.memory_space<vmem>> -> memref<1x128xf32, #tpu.memory_space<vmem>>
    %16 = tpu.memref_slice %arg8[%c2_i32] : memref<20x!tpu.dma_semaphore, #tpu.memory_space<semaphore_mem>> -> memref<1x!tpu.dma_semaphore, #tpu.memory_space<semaphore_mem>>
    %17 = tpu.memref_squeeze %16 : memref<1x!tpu.dma_semaphore, #tpu.memory_space<semaphore_mem>> -> memref<!tpu.dma_semaphore, #tpu.memory_space<semaphore_mem>>
    tpu.enqueue_dma source(%13 : memref<1x128xf32, #tpu.memory_space<any>>) target(%15 : memref<1x128xf32, #tpu.memory_space<vmem>>) target_semaphore(%17 : memref<!tpu.dma_semaphore, #tpu.memory_space<semaphore_mem>>)
    %c3 = arith.constant 3 : index
    %18 = memref.load %arg1[%c3] : memref<20xi32, #tpu.memory_space<smem>>
    %c0_i32_12 = arith.constant 0 : i32
    %c3_i32 = arith.constant 3 : i32
    %c0_i32_13 = arith.constant 0 : i32
    %19 = tpu.memref_slice %arg5[%18, %c0_i32_13] : memref<64x128xf32, #tpu.memory_space<any>> -> memref<1x128xf32, #tpu.memory_space<any>>
    %c3_i32_14 = arith.constant 3 : i32
    %c0_i32_15 = arith.constant 0 : i32
    %20 = tpu.memref_slice %arg7[%c0_i32_12, %c3_i32_14, %c0_i32_15] : memref<2x10x128xf32, #tpu.memory_space<vmem>> -> memref<1x1x128xf32, #tpu.memory_space<vmem>>
    %21 = tpu.memref_squeeze %20 : memref<1x1x128xf32, #tpu.memory_space<vmem>> -> memref<1x128xf32, #tpu.memory_space<vmem>>
    %22 = tpu.memref_slice %arg8[%c3_i32] : memref<20x!tpu.dma_semaphore, #tpu.memory_space<semaphore_mem>> -> memref<1x!tpu.dma_semaphore, #tpu.memory_space<semaphore_mem>>
    %23 = tpu.memref_squeeze %22 : memref<1x!tpu.dma_semaphore, #tpu.memory_space<semaphore_mem>> -> memref<!tpu.dma_semaphore, #tpu.memory_space<semaphore_mem>>
    tpu.enqueue_dma source(%19 : memref<1x128xf32, #tpu.memory_space<any>>) target(%21 : memref<1x128xf32, #tpu.memory_space<vmem>>) target_semaphore(%23 : memref<!tpu.dma_semaphore, #tpu.memory_space<semaphore_mem>>)
    %c4 = arith.constant 4 : index
    %24 = memref.load %arg1[%c4] : memref<20xi32, #tpu.memory_space<smem>>
    %c0_i32_16 = arith.constant 0 : i32
    %c4_i32 = arith.constant 4 : i32
    %c0_i32_17 = arith.constant 0 : i32
    %25 = tpu.memref_slice %arg5[%24, %c0_i32_17] : memref<64x128xf32, #tpu.memory_space<any>> -> memref<1x128xf32, #tpu.memory_space<any>>
    %c4_i32_18 = arith.constant 4 : i32
    %c0_i32_19 = arith.constant 0 : i32
    %26 = tpu.memref_slice %arg7[%c0_i32_16, %c4_i32_18, %c0_i32_19] : memref<2x10x128xf32, #tpu.memory_space<vmem>> -> memref<1x1x128xf32, #tpu.memory_space<vmem>>
    %27 = tpu.memref_squeeze %26 : memref<1x1x128xf32, #tpu.memory_space<vmem>> -> memref<1x128xf32, #tpu.memory_space<vmem>>
    %28 = tpu.memref_slice %arg8[%c4_i32] : memref<20x!tpu.dma_semaphore, #tpu.memory_space<semaphore_mem>> -> memref<1x!tpu.dma_semaphore, #tpu.memory_space<semaphore_mem>>
    %29 = tpu.memref_squeeze %28 : memref<1x!tpu.dma_semaphore, #tpu.memory_space<semaphore_mem>> -> memref<!tpu.dma_semaphore, #tpu.memory_space<semaphore_mem>>
    tpu.enqueue_dma source(%25 : memref<1x128xf32, #tpu.memory_space<any>>) target(%27 : memref<1x128xf32, #tpu.memory_space<vmem>>) target_semaphore(%29 : memref<!tpu.dma_semaphore, #tpu.memory_space<semaphore_mem>>)
    %c5 = arith.constant 5 : index
    %30 = memref.load %arg1[%c5] : memref<20xi32, #tpu.memory_space<smem>>
    %c0_i32_20 = arith.constant 0 : i32
    %c5_i32 = arith.constant 5 : i32
    %c0_i32_21 = arith.constant 0 : i32
    %31 = tpu.memref_slice %arg5[%30, %c0_i32_21] : memref<64x128xf32, #tpu.memory_space<any>> -> memref<1x128xf32, #tpu.memory_space<any>>
    %c5_i32_22 = arith.constant 5 : i32
    %c0_i32_23 = arith.constant 0 : i32
    %32 = tpu.memref_slice %arg7[%c0_i32_20, %c5_i32_22, %c0_i32_23] : memref<2x10x128xf32, #tpu.memory_space<vmem>> -> memref<1x1x128xf32, #tpu.memory_space<vmem>>
    %33 = tpu.memref_squeeze %32 : memref<1x1x128xf32, #tpu.memory_space<vmem>> -> memref<1x128xf32, #tpu.memory_space<vmem>>
    %34 = tpu.memref_slice %arg8[%c5_i32] : memref<20x!tpu.dma_semaphore, #tpu.memory_space<semaphore_mem>> -> memref<1x!tpu.dma_semaphore, #tpu.memory_space<semaphore_mem>>
    %35 = tpu.memref_squeeze %34 : memref<1x!tpu.dma_semaphore, #tpu.memory_space<semaphore_mem>> -> memref<!tpu.dma_semaphore, #tpu.memory_space<semaphore_mem>>
    tpu.enqueue_dma source(%31 : memref<1x128xf32, #tpu.memory_space<any>>) target(%33 : memref<1x128xf32, #tpu.memory_space<vmem>>) target_semaphore(%35 : memref<!tpu.dma_semaphore, #tpu.memory_space<semaphore_mem>>)
    %c6 = arith.constant 6 : index
    %36 = memref.load %arg1[%c6] : memref<20xi32, #tpu.memory_space<smem>>
    %c0_i32_24 = arith.constant 0 : i32
    %c6_i32 = arith.constant 6 : i32
    %c0_i32_25 = arith.constant 0 : i32
    %37 = tpu.memref_slice %arg5[%36, %c0_i32_25] : memref<64x128xf32, #tpu.memory_space<any>> -> memref<1x128xf32, #tpu.memory_space<any>>
    %c6_i32_26 = arith.constant 6 : i32
    %c0_i32_27 = arith.constant 0 : i32
    %38 = tpu.memref_slice %arg7[%c0_i32_24, %c6_i32_26, %c0_i32_27] : memref<2x10x128xf32, #tpu.memory_space<vmem>> -> memref<1x1x128xf32, #tpu.memory_space<vmem>>
    %39 = tpu.memref_squeeze %38 : memref<1x1x128xf32, #tpu.memory_space<vmem>> -> memref<1x128xf32, #tpu.memory_space<vmem>>
    %40 = tpu.memref_slice %arg8[%c6_i32] : memref<20x!tpu.dma_semaphore, #tpu.memory_space<semaphore_mem>> -> memref<1x!tpu.dma_semaphore, #tpu.memory_space<semaphore_mem>>
    %41 = tpu.memref_squeeze %40 : memref<1x!tpu.dma_semaphore, #tpu.memory_space<semaphore_mem>> -> memref<!tpu.dma_semaphore, #tpu.memory_space<semaphore_mem>>
    tpu.enqueue_dma source(%37 : memref<1x128xf32, #tpu.memory_space<any>>) target(%39 : memref<1x128xf32, #tpu.memory_space<vmem>>) target_semaphore(%41 : memref<!tpu.dma_semaphore, #tpu.memory_space<semaphore_mem>>)
    %c7 = arith.constant 7 : index
    %42 = memref.load %arg1[%c7] : memref<20xi32, #tpu.memory_space<smem>>
    %c0_i32_28 = arith.constant 0 : i32
    %c7_i32 = arith.constant 7 : i32
    %c0_i32_29 = arith.constant 0 : i32
    %43 = tpu.memref_slice %arg5[%42, %c0_i32_29] : memref<64x128xf32, #tpu.memory_space<any>> -> memref<1x128xf32, #tpu.memory_space<any>>
    %c7_i32_30 = arith.constant 7 : i32
    %c0_i32_31 = arith.constant 0 : i32
    %44 = tpu.memref_slice %arg7[%c0_i32_28, %c7_i32_30, %c0_i32_31] : memref<2x10x128xf32, #tpu.memory_space<vmem>> -> memref<1x1x128xf32, #tpu.memory_space<vmem>>
    %45 = tpu.memref_squeeze %44 : memref<1x1x128xf32, #tpu.memory_space<vmem>> -> memref<1x128xf32, #tpu.memory_space<vmem>>
    %46 = tpu.memref_slice %arg8[%c7_i32] : memref<20x!tpu.dma_semaphore, #tpu.memory_space<semaphore_mem>> -> memref<1x!tpu.dma_semaphore, #tpu.memory_space<semaphore_mem>>
    %47 = tpu.memref_squeeze %46 : memref<1x!tpu.dma_semaphore, #tpu.memory_space<semaphore_mem>> -> memref<!tpu.dma_semaphore, #tpu.memory_space<semaphore_mem>>
    tpu.enqueue_dma source(%43 : memref<1x128xf32, #tpu.memory_space<any>>) target(%45 : memref<1x128xf32, #tpu.memory_space<vmem>>) target_semaphore(%47 : memref<!tpu.dma_semaphore, #tpu.memory_space<semaphore_mem>>)
    %c8 = arith.constant 8 : index
    %48 = memref.load %arg1[%c8] : memref<20xi32, #tpu.memory_space<smem>>
    %c0_i32_32 = arith.constant 0 : i32
    %c8_i32 = arith.constant 8 : i32
    %c0_i32_33 = arith.constant 0 : i32
    %49 = tpu.memref_slice %arg5[%48, %c0_i32_33] : memref<64x128xf32, #tpu.memory_space<any>> -> memref<1x128xf32, #tpu.memory_space<any>>
    %c8_i32_34 = arith.constant 8 : i32
    %c0_i32_35 = arith.constant 0 : i32
    %50 = tpu.memref_slice %arg7[%c0_i32_32, %c8_i32_34, %c0_i32_35] : memref<2x10x128xf32, #tpu.memory_space<vmem>> -> memref<1x1x128xf32, #tpu.memory_space<vmem>>
    %51 = tpu.memref_squeeze %50 : memref<1x1x128xf32, #tpu.memory_space<vmem>> -> memref<1x128xf32, #tpu.memory_space<vmem>>
    %52 = tpu.memref_slice %arg8[%c8_i32] : memref<20x!tpu.dma_semaphore, #tpu.memory_space<semaphore_mem>> -> memref<1x!tpu.dma_semaphore, #tpu.memory_space<semaphore_mem>>
    %53 = tpu.memref_squeeze %52 : memref<1x!tpu.dma_semaphore, #tpu.memory_space<semaphore_mem>> -> memref<!tpu.dma_semaphore, #tpu.memory_space<semaphore_mem>>
    tpu.enqueue_dma source(%49 : memref<1x128xf32, #tpu.memory_space<any>>) target(%51 : memref<1x128xf32, #tpu.memory_space<vmem>>) target_semaphore(%53 : memref<!tpu.dma_semaphore, #tpu.memory_space<semaphore_mem>>)
    %c9 = arith.constant 9 : index
    %54 = memref.load %arg1[%c9] : memref<20xi32, #tpu.memory_space<smem>>
    %c0_i32_36 = arith.constant 0 : i32
    %c9_i32 = arith.constant 9 : i32
    %c0_i32_37 = arith.constant 0 : i32
    %55 = tpu.memref_slice %arg5[%54, %c0_i32_37] : memref<64x128xf32, #tpu.memory_space<any>> -> memref<1x128xf32, #tpu.memory_space<any>>
    %c9_i32_38 = arith.constant 9 : i32
    %c0_i32_39 = arith.constant 0 : i32
    %56 = tpu.memref_slice %arg7[%c0_i32_36, %c9_i32_38, %c0_i32_39] : memref<2x10x128xf32, #tpu.memory_space<vmem>> -> memref<1x1x128xf32, #tpu.memory_space<vmem>>
    %57 = tpu.memref_squeeze %56 : memref<1x1x128xf32, #tpu.memory_space<vmem>> -> memref<1x128xf32, #tpu.memory_space<vmem>>
    %58 = tpu.memref_slice %arg8[%c9_i32] : memref<20x!tpu.dma_semaphore, #tpu.memory_space<semaphore_mem>> -> memref<1x!tpu.dma_semaphore, #tpu.memory_space<semaphore_mem>>
    %59 = tpu.memref_squeeze %58 : memref<1x!tpu.dma_semaphore, #tpu.memory_space<semaphore_mem>> -> memref<!tpu.dma_semaphore, #tpu.memory_space<semaphore_mem>>
    tpu.enqueue_dma source(%55 : memref<1x128xf32, #tpu.memory_space<any>>) target(%57 : memref<1x128xf32, #tpu.memory_space<vmem>>) target_semaphore(%59 : memref<!tpu.dma_semaphore, #tpu.memory_space<semaphore_mem>>)
    %c10 = arith.constant 10 : index
    %60 = memref.load %arg1[%c10] : memref<20xi32, #tpu.memory_space<smem>>
    %c1_i32_40 = arith.constant 1 : i32
    %c10_i32 = arith.constant 10 : i32
    %c0_i32_41 = arith.constant 0 : i32
    %61 = tpu.memref_slice %arg5[%60, %c0_i32_41] : memref<64x128xf32, #tpu.memory_space<any>> -> memref<1x128xf32, #tpu.memory_space<any>>
    %c0_i32_42 = arith.constant 0 : i32
    %c0_i32_43 = arith.constant 0 : i32
    %62 = tpu.memref_slice %arg7[%c1_i32_40, %c0_i32_42, %c0_i32_43] : memref<2x10x128xf32, #tpu.memory_space<vmem>> -> memref<1x1x128xf32, #tpu.memory_space<vmem>>
    %63 = tpu.memref_squeeze %62 : memref<1x1x128xf32, #tpu.memory_space<vmem>> -> memref<1x128xf32, #tpu.memory_space<vmem>>
    %64 = tpu.memref_slice %arg8[%c10_i32] : memref<20x!tpu.dma_semaphore, #tpu.memory_space<semaphore_mem>> -> memref<1x!tpu.dma_semaphore, #tpu.memory_space<semaphore_mem>>
    %65 = tpu.memref_squeeze %64 : memref<1x!tpu.dma_semaphore, #tpu.memory_space<semaphore_mem>> -> memref<!tpu.dma_semaphore, #tpu.memory_space<semaphore_mem>>
    tpu.enqueue_dma source(%61 : memref<1x128xf32, #tpu.memory_space<any>>) target(%63 : memref<1x128xf32, #tpu.memory_space<vmem>>) target_semaphore(%65 : memref<!tpu.dma_semaphore, #tpu.memory_space<semaphore_mem>>)
    %c11 = arith.constant 11 : index
    %66 = memref.load %arg1[%c11] : memref<20xi32, #tpu.memory_space<smem>>
    %c1_i32_44 = arith.constant 1 : i32
    %c11_i32 = arith.constant 11 : i32
    %c0_i32_45 = arith.constant 0 : i32
    %67 = tpu.memref_slice %arg5[%66, %c0_i32_45] : memref<64x128xf32, #tpu.memory_space<any>> -> memref<1x128xf32, #tpu.memory_space<any>>
    %c1_i32_46 = arith.constant 1 : i32
    %c0_i32_47 = arith.constant 0 : i32
    %68 = tpu.memref_slice %arg7[%c1_i32_44, %c1_i32_46, %c0_i32_47] : memref<2x10x128xf32, #tpu.memory_space<vmem>> -> memref<1x1x128xf32, #tpu.memory_space<vmem>>
    %69 = tpu.memref_squeeze %68 : memref<1x1x128xf32, #tpu.memory_space<vmem>> -> memref<1x128xf32, #tpu.memory_space<vmem>>
    %70 = tpu.memref_slice %arg8[%c11_i32] : memref<20x!tpu.dma_semaphore, #tpu.memory_space<semaphore_mem>> -> memref<1x!tpu.dma_semaphore, #tpu.memory_space<semaphore_mem>>
    %71 = tpu.memref_squeeze %70 : memref<1x!tpu.dma_semaphore, #tpu.memory_space<semaphore_mem>> -> memref<!tpu.dma_semaphore, #tpu.memory_space<semaphore_mem>>
    tpu.enqueue_dma source(%67 : memref<1x128xf32, #tpu.memory_space<any>>) target(%69 : memref<1x128xf32, #tpu.memory_space<vmem>>) target_semaphore(%71 : memref<!tpu.dma_semaphore, #tpu.memory_space<semaphore_mem>>)
    %c12 = arith.constant 12 : index
    %72 = memref.load %arg1[%c12] : memref<20xi32, #tpu.memory_space<smem>>
    %c1_i32_48 = arith.constant 1 : i32
    %c12_i32 = arith.constant 12 : i32
    %c0_i32_49 = arith.constant 0 : i32
    %73 = tpu.memref_slice %arg5[%72, %c0_i32_49] : memref<64x128xf32, #tpu.memory_space<any>> -> memref<1x128xf32, #tpu.memory_space<any>>
    %c2_i32_50 = arith.constant 2 : i32
    %c0_i32_51 = arith.constant 0 : i32
    %74 = tpu.memref_slice %arg7[%c1_i32_48, %c2_i32_50, %c0_i32_51] : memref<2x10x128xf32, #tpu.memory_space<vmem>> -> memref<1x1x128xf32, #tpu.memory_space<vmem>>
    %75 = tpu.memref_squeeze %74 : memref<1x1x128xf32, #tpu.memory_space<vmem>> -> memref<1x128xf32, #tpu.memory_space<vmem>>
    %76 = tpu.memref_slice %arg8[%c12_i32] : memref<20x!tpu.dma_semaphore, #tpu.memory_space<semaphore_mem>> -> memref<1x!tpu.dma_semaphore, #tpu.memory_space<semaphore_mem>>
    %77 = tpu.memref_squeeze %76 : memref<1x!tpu.dma_semaphore, #tpu.memory_space<semaphore_mem>> -> memref<!tpu.dma_semaphore, #tpu.memory_space<semaphore_mem>>
    tpu.enqueue_dma source(%73 : memref<1x128xf32, #tpu.memory_space<any>>) target(%75 : memref<1x128xf32, #tpu.memory_space<vmem>>) target_semaphore(%77 : memref<!tpu.dma_semaphore, #tpu.memory_space<semaphore_mem>>)
    %c13 = arith.constant 13 : index
    %78 = memref.load %arg1[%c13] : memref<20xi32, #tpu.memory_space<smem>>
    %c1_i32_52 = arith.constant 1 : i32
    %c13_i32 = arith.constant 13 : i32
    %c0_i32_53 = arith.constant 0 : i32
    %79 = tpu.memref_slice %arg5[%78, %c0_i32_53] : memref<64x128xf32, #tpu.memory_space<any>> -> memref<1x128xf32, #tpu.memory_space<any>>
    %c3_i32_54 = arith.constant 3 : i32
    %c0_i32_55 = arith.constant 0 : i32
    %80 = tpu.memref_slice %arg7[%c1_i32_52, %c3_i32_54, %c0_i32_55] : memref<2x10x128xf32, #tpu.memory_space<vmem>> -> memref<1x1x128xf32, #tpu.memory_space<vmem>>
    %81 = tpu.memref_squeeze %80 : memref<1x1x128xf32, #tpu.memory_space<vmem>> -> memref<1x128xf32, #tpu.memory_space<vmem>>
    %82 = tpu.memref_slice %arg8[%c13_i32] : memref<20x!tpu.dma_semaphore, #tpu.memory_space<semaphore_mem>> -> memref<1x!tpu.dma_semaphore, #tpu.memory_space<semaphore_mem>>
    %83 = tpu.memref_squeeze %82 : memref<1x!tpu.dma_semaphore, #tpu.memory_space<semaphore_mem>> -> memref<!tpu.dma_semaphore, #tpu.memory_space<semaphore_mem>>
    tpu.enqueue_dma source(%79 : memref<1x128xf32, #tpu.memory_space<any>>) target(%81 : memref<1x128xf32, #tpu.memory_space<vmem>>) target_semaphore(%83 : memref<!tpu.dma_semaphore, #tpu.memory_space<semaphore_mem>>)
    %c14 = arith.constant 14 : index
    %84 = memref.load %arg1[%c14] : memref<20xi32, #tpu.memory_space<smem>>
    %c1_i32_56 = arith.constant 1 : i32
    %c14_i32 = arith.constant 14 : i32
    %c0_i32_57 = arith.constant 0 : i32
    %85 = tpu.memref_slice %arg5[%84, %c0_i32_57] : memref<64x128xf32, #tpu.memory_space<any>> -> memref<1x128xf32, #tpu.memory_space<any>>
    %c4_i32_58 = arith.constant 4 : i32
    %c0_i32_59 = arith.constant 0 : i32
    %86 = tpu.memref_slice %arg7[%c1_i32_56, %c4_i32_58, %c0_i32_59] : memref<2x10x128xf32, #tpu.memory_space<vmem>> -> memref<1x1x128xf32, #tpu.memory_space<vmem>>
    %87 = tpu.memref_squeeze %86 : memref<1x1x128xf32, #tpu.memory_space<vmem>> -> memref<1x128xf32, #tpu.memory_space<vmem>>
    %88 = tpu.memref_slice %arg8[%c14_i32] : memref<20x!tpu.dma_semaphore, #tpu.memory_space<semaphore_mem>> -> memref<1x!tpu.dma_semaphore, #tpu.memory_space<semaphore_mem>>
    %89 = tpu.memref_squeeze %88 : memref<1x!tpu.dma_semaphore, #tpu.memory_space<semaphore_mem>> -> memref<!tpu.dma_semaphore, #tpu.memory_space<semaphore_mem>>
    tpu.enqueue_dma source(%85 : memref<1x128xf32, #tpu.memory_space<any>>) target(%87 : memref<1x128xf32, #tpu.memory_space<vmem>>) target_semaphore(%89 : memref<!tpu.dma_semaphore, #tpu.memory_space<semaphore_mem>>)
    %c15 = arith.constant 15 : index
    %90 = memref.load %arg1[%c15] : memref<20xi32, #tpu.memory_space<smem>>
    %c1_i32_60 = arith.constant 1 : i32
    %c15_i32 = arith.constant 15 : i32
    %c0_i32_61 = arith.constant 0 : i32
    %91 = tpu.memref_slice %arg5[%90, %c0_i32_61] : memref<64x128xf32, #tpu.memory_space<any>> -> memref<1x128xf32, #tpu.memory_space<any>>
    %c5_i32_62 = arith.constant 5 : i32
    %c0_i32_63 = arith.constant 0 : i32
    %92 = tpu.memref_slice %arg7[%c1_i32_60, %c5_i32_62, %c0_i32_63] : memref<2x10x128xf32, #tpu.memory_space<vmem>> -> memref<1x1x128xf32, #tpu.memory_space<vmem>>
    %93 = tpu.memref_squeeze %92 : memref<1x1x128xf32, #tpu.memory_space<vmem>> -> memref<1x128xf32, #tpu.memory_space<vmem>>
    %94 = tpu.memref_slice %arg8[%c15_i32] : memref<20x!tpu.dma_semaphore, #tpu.memory_space<semaphore_mem>> -> memref<1x!tpu.dma_semaphore, #tpu.memory_space<semaphore_mem>>
    %95 = tpu.memref_squeeze %94 : memref<1x!tpu.dma_semaphore, #tpu.memory_space<semaphore_mem>> -> memref<!tpu.dma_semaphore, #tpu.memory_space<semaphore_mem>>
    tpu.enqueue_dma source(%91 : memref<1x128xf32, #tpu.memory_space<any>>) target(%93 : memref<1x128xf32, #tpu.memory_space<vmem>>) target_semaphore(%95 : memref<!tpu.dma_semaphore, #tpu.memory_space<semaphore_mem>>)
    %c16 = arith.constant 16 : index
    %96 = memref.load %arg1[%c16] : memref<20xi32, #tpu.memory_space<smem>>
    %c1_i32_64 = arith.constant 1 : i32
    %c16_i32 = arith.constant 16 : i32
    %c0_i32_65 = arith.constant 0 : i32
    %97 = tpu.memref_slice %arg5[%96, %c0_i32_65] : memref<64x128xf32, #tpu.memory_space<any>> -> memref<1x128xf32, #tpu.memory_space<any>>
    %c6_i32_66 = arith.constant 6 : i32
    %c0_i32_67 = arith.constant 0 : i32
    %98 = tpu.memref_slice %arg7[%c1_i32_64, %c6_i32_66, %c0_i32_67] : memref<2x10x128xf32, #tpu.memory_space<vmem>> -> memref<1x1x128xf32, #tpu.memory_space<vmem>>
    %99 = tpu.memref_squeeze %98 : memref<1x1x128xf32, #tpu.memory_space<vmem>> -> memref<1x128xf32, #tpu.memory_space<vmem>>
    %100 = tpu.memref_slice %arg8[%c16_i32] : memref<20x!tpu.dma_semaphore, #tpu.memory_space<semaphore_mem>> -> memref<1x!tpu.dma_semaphore, #tpu.memory_space<semaphore_mem>>
    %101 = tpu.memref_squeeze %100 : memref<1x!tpu.dma_semaphore, #tpu.memory_space<semaphore_mem>> -> memref<!tpu.dma_semaphore, #tpu.memory_space<semaphore_mem>>
    tpu.enqueue_dma source(%97 : memref<1x128xf32, #tpu.memory_space<any>>) target(%99 : memref<1x128xf32, #tpu.memory_space<vmem>>) target_semaphore(%101 : memref<!tpu.dma_semaphore, #tpu.memory_space<semaphore_mem>>)
    %c17 = arith.constant 17 : index
    %102 = memref.load %arg1[%c17] : memref<20xi32, #tpu.memory_space<smem>>
    %c1_i32_68 = arith.constant 1 : i32
    %c17_i32 = arith.constant 17 : i32
    %c0_i32_69 = arith.constant 0 : i32
    %103 = tpu.memref_slice %arg5[%102, %c0_i32_69] : memref<64x128xf32, #tpu.memory_space<any>> -> memref<1x128xf32, #tpu.memory_space<any>>
    %c7_i32_70 = arith.constant 7 : i32
    %c0_i32_71 = arith.constant 0 : i32
    %104 = tpu.memref_slice %arg7[%c1_i32_68, %c7_i32_70, %c0_i32_71] : memref<2x10x128xf32, #tpu.memory_space<vmem>> -> memref<1x1x128xf32, #tpu.memory_space<vmem>>
    %105 = tpu.memref_squeeze %104 : memref<1x1x128xf32, #tpu.memory_space<vmem>> -> memref<1x128xf32, #tpu.memory_space<vmem>>
    %106 = tpu.memref_slice %arg8[%c17_i32] : memref<20x!tpu.dma_semaphore, #tpu.memory_space<semaphore_mem>> -> memref<1x!tpu.dma_semaphore, #tpu.memory_space<semaphore_mem>>
    %107 = tpu.memref_squeeze %106 : memref<1x!tpu.dma_semaphore, #tpu.memory_space<semaphore_mem>> -> memref<!tpu.dma_semaphore, #tpu.memory_space<semaphore_mem>>
    tpu.enqueue_dma source(%103 : memref<1x128xf32, #tpu.memory_space<any>>) target(%105 : memref<1x128xf32, #tpu.memory_space<vmem>>) target_semaphore(%107 : memref<!tpu.dma_semaphore, #tpu.memory_space<semaphore_mem>>)
    %c18 = arith.constant 18 : index
    %108 = memref.load %arg1[%c18] : memref<20xi32, #tpu.memory_space<smem>>
    %c1_i32_72 = arith.constant 1 : i32
    %c18_i32 = arith.constant 18 : i32
    %c0_i32_73 = arith.constant 0 : i32
    %109 = tpu.memref_slice %arg5[%108, %c0_i32_73] : memref<64x128xf32, #tpu.memory_space<any>> -> memref<1x128xf32, #tpu.memory_space<any>>
    %c8_i32_74 = arith.constant 8 : i32
    %c0_i32_75 = arith.constant 0 : i32
    %110 = tpu.memref_slice %arg7[%c1_i32_72, %c8_i32_74, %c0_i32_75] : memref<2x10x128xf32, #tpu.memory_space<vmem>> -> memref<1x1x128xf32, #tpu.memory_space<vmem>>
    %111 = tpu.memref_squeeze %110 : memref<1x1x128xf32, #tpu.memory_space<vmem>> -> memref<1x128xf32, #tpu.memory_space<vmem>>
    %112 = tpu.memref_slice %arg8[%c18_i32] : memref<20x!tpu.dma_semaphore, #tpu.memory_space<semaphore_mem>> -> memref<1x!tpu.dma_semaphore, #tpu.memory_space<semaphore_mem>>
    %113 = tpu.memref_squeeze %112 : memref<1x!tpu.dma_semaphore, #tpu.memory_space<semaphore_mem>> -> memref<!tpu.dma_semaphore, #tpu.memory_space<semaphore_mem>>
    tpu.enqueue_dma source(%109 : memref<1x128xf32, #tpu.memory_space<any>>) target(%111 : memref<1x128xf32, #tpu.memory_space<vmem>>) target_semaphore(%113 : memref<!tpu.dma_semaphore, #tpu.memory_space<semaphore_mem>>)
    %c19 = arith.constant 19 : index
    %114 = memref.load %arg1[%c19] : memref<20xi32, #tpu.memory_space<smem>>
    %c1_i32_76 = arith.constant 1 : i32
    %c19_i32 = arith.constant 19 : i32
    %c0_i32_77 = arith.constant 0 : i32
    %115 = tpu.memref_slice %arg5[%114, %c0_i32_77] : memref<64x128xf32, #tpu.memory_space<any>> -> memref<1x128xf32, #tpu.memory_space<any>>
    %c9_i32_78 = arith.constant 9 : i32
    %c0_i32_79 = arith.constant 0 : i32
    %116 = tpu.memref_slice %arg7[%c1_i32_76, %c9_i32_78, %c0_i32_79] : memref<2x10x128xf32, #tpu.memory_space<vmem>> -> memref<1x1x128xf32, #tpu.memory_space<vmem>>
    %117 = tpu.memref_squeeze %116 : memref<1x1x128xf32, #tpu.memory_space<vmem>> -> memref<1x128xf32, #tpu.memory_space<vmem>>
    %118 = tpu.memref_slice %arg8[%c19_i32] : memref<20x!tpu.dma_semaphore, #tpu.memory_space<semaphore_mem>> -> memref<1x!tpu.dma_semaphore, #tpu.memory_space<semaphore_mem>>
    %119 = tpu.memref_squeeze %118 : memref<1x!tpu.dma_semaphore, #tpu.memory_space<semaphore_mem>> -> memref<!tpu.dma_semaphore, #tpu.memory_space<semaphore_mem>>
    tpu.enqueue_dma source(%115 : memref<1x128xf32, #tpu.memory_space<any>>) target(%117 : memref<1x128xf32, #tpu.memory_space<vmem>>) target_semaphore(%119 : memref<!tpu.dma_semaphore, #tpu.memory_space<semaphore_mem>>)
    %c0_80 = arith.constant 0 : index
    %c0_81 = arith.constant 0 : index
    %120 = vector.load %arg2[%c0_80, %c0_81] : memref<2x256xf32, #tpu.memory_space<vmem>>, vector<2x256xf32>
    %121 = arith.truncf %120 : vector<2x256xf32> to vector<2x256xbf16>
    %c0_82 = arith.constant 0 : index
    %c0_83 = arith.constant 0 : index
    %122 = vector.load %arg3[%c0_82, %c0_83] : memref<256x640xbf16, #tpu.memory_space<vmem>>, vector<256x640xbf16>
    %cst = arith.constant dense<0.000000e+00> : vector<2x640xf32>
    %123 = tpu.matmul %121, %122, %cst {dimension_numbers = #tpu.dot_dimension_numbers<[1], [0], [0], [1], [0, 0, 1, 1], [], []>} : vector<2x256xbf16>, vector<256x640xbf16>, vector<2x640xf32> -> vector<2x640xf32>
    %c0_84 = arith.constant 0 : index
    %c0_85 = arith.constant 0 : index
    %124 = vector.load %arg4[%c0_84, %c0_85] : memref<1x640xf32, #tpu.memory_space<vmem>>, vector<1x640xf32>
    %125 = vector.broadcast %124 : vector<1x640xf32> to vector<2x640xf32>
    %126 = arith.addf %123, %125 : vector<2x640xf32>
    %127 = math.tanh %126 : vector<2x640xf32>
    %128 = vector.extract_strided_slice %127 {offsets = [0, 0], sizes = [2, 128], strides = [1, 1]} : vector<2x640xf32> to vector<2x128xf32>
    %c0_86 = arith.constant 0 : index
    %c0_87 = arith.constant 0 : index
    %c0_88 = arith.constant 0 : index
    %129 = vector.load %arg6[%c0_86, %c0_87, %c0_88] : memref<2x15x128xf32, #tpu.memory_space<vmem>>, vector<2x1x128xf32>
    %130 = vector.shape_cast %129 : vector<2x1x128xf32> to vector<2x128xf32>
    %131 = vector.shape_cast %128 : vector<2x128xf32> to vector<2x1x128xf32>
    tpu.vector_store %arg6[%c0_86, %c0_87, %c0_88], %131 {strides = array<i32>} : memref<2x15x128xf32, #tpu.memory_space<vmem>>, vector<2x1x128xf32>,
    %132 = vector.extract_strided_slice %127 {offsets = [0, 128], sizes = [2, 128], strides = [1, 1]} : vector<2x640xf32> to vector<2x128xf32>
    %c0_89 = arith.constant 0 : index
    %c1_90 = arith.constant 1 : index
    %c0_91 = arith.constant 0 : index
    %133 = vector.load %arg6[%c0_89, %c1_90, %c0_91] : memref<2x15x128xf32, #tpu.memory_space<vmem>>, vector<2x1x128xf32>
    %134 = vector.shape_cast %133 : vector<2x1x128xf32> to vector<2x128xf32>
    %135 = vector.shape_cast %132 : vector<2x128xf32> to vector<2x1x128xf32>
    tpu.vector_store %arg6[%c0_89, %c1_90, %c0_91], %135 {strides = array<i32>} : memref<2x15x128xf32, #tpu.memory_space<vmem>>, vector<2x1x128xf32>,
    %136 = vector.extract_strided_slice %127 {offsets = [0, 256], sizes = [2, 128], strides = [1, 1]} : vector<2x640xf32> to vector<2x128xf32>
    %c0_92 = arith.constant 0 : index
    %c2_93 = arith.constant 2 : index
    %c0_94 = arith.constant 0 : index
    %137 = vector.load %arg6[%c0_92, %c2_93, %c0_94] : memref<2x15x128xf32, #tpu.memory_space<vmem>>, vector<2x1x128xf32>
    %138 = vector.shape_cast %137 : vector<2x1x128xf32> to vector<2x128xf32>
    %139 = vector.shape_cast %136 : vector<2x128xf32> to vector<2x1x128xf32>
    tpu.vector_store %arg6[%c0_92, %c2_93, %c0_94], %139 {strides = array<i32>} : memref<2x15x128xf32, #tpu.memory_space<vmem>>, vector<2x1x128xf32>,
    %140 = vector.extract_strided_slice %127 {offsets = [0, 384], sizes = [2, 128], strides = [1, 1]} : vector<2x640xf32> to vector<2x128xf32>
    %c0_95 = arith.constant 0 : index
    %c3_96 = arith.constant 3 : index
    %c0_97 = arith.constant 0 : index
    %141 = vector.load %arg6[%c0_95, %c3_96, %c0_97] : memref<2x15x128xf32, #tpu.memory_space<vmem>>, vector<2x1x128xf32>
    %142 = vector.shape_cast %141 : vector<2x1x128xf32> to vector<2x128xf32>
    %143 = vector.shape_cast %140 : vector<2x128xf32> to vector<2x1x128xf32>
    tpu.vector_store %arg6[%c0_95, %c3_96, %c0_97], %143 {strides = array<i32>} : memref<2x15x128xf32, #tpu.memory_space<vmem>>, vector<2x1x128xf32>,
    %144 = vector.extract_strided_slice %127 {offsets = [0, 512], sizes = [2, 128], strides = [1, 1]} : vector<2x640xf32> to vector<2x128xf32>
    %c0_98 = arith.constant 0 : index
    %c4_99 = arith.constant 4 : index
    %c0_100 = arith.constant 0 : index
    %145 = vector.load %arg6[%c0_98, %c4_99, %c0_100] : memref<2x15x128xf32, #tpu.memory_space<vmem>>, vector<2x1x128xf32>
    %146 = vector.shape_cast %145 : vector<2x1x128xf32> to vector<2x128xf32>
    %147 = vector.shape_cast %144 : vector<2x128xf32> to vector<2x1x128xf32>
    tpu.vector_store %arg6[%c0_98, %c4_99, %c0_100], %147 {strides = array<i32>} : memref<2x15x128xf32, #tpu.memory_space<vmem>>, vector<2x1x128xf32>,
    %c0_101 = arith.constant 0 : index
    %148 = memref.load %arg1[%c0_101] : memref<20xi32, #tpu.memory_space<smem>>
    %c0_i32_102 = arith.constant 0 : i32
    %c0_i32_103 = arith.constant 0 : i32
    %c0_i32_104 = arith.constant 0 : i32
    %149 = tpu.memref_slice %arg5[%148, %c0_i32_104] : memref<64x128xf32, #tpu.memory_space<any>> -> memref<1x128xf32, #tpu.memory_space<any>>
    %c0_i32_105 = arith.constant 0 : i32
    %c0_i32_106 = arith.constant 0 : i32
    %150 = tpu.memref_slice %arg7[%c0_i32_102, %c0_i32_105, %c0_i32_106] : memref<2x10x128xf32, #tpu.memory_space<vmem>> -> memref<1x1x128xf32, #tpu.memory_space<vmem>>
    %151 = tpu.memref_squeeze %150 : memref<1x1x128xf32, #tpu.memory_space<vmem>> -> memref<1x128xf32, #tpu.memory_space<vmem>>
    %152 = tpu.memref_slice %arg8[%c0_i32_103] : memref<20x!tpu.dma_semaphore, #tpu.memory_space<semaphore_mem>> -> memref<1x!tpu.dma_semaphore, #tpu.memory_space<semaphore_mem>>
    %153 = tpu.memref_squeeze %152 : memref<1x!tpu.dma_semaphore, #tpu.memory_space<semaphore_mem>> -> memref<!tpu.dma_semaphore, #tpu.memory_space<semaphore_mem>>
    tpu.wait_dma2 semaphore(%153 : memref<!tpu.dma_semaphore, #tpu.memory_space<semaphore_mem>>) src(%149 : memref<1x128xf32, #tpu.memory_space<any>>) dst(%151 : memref<1x128xf32, #tpu.memory_space<vmem>>)
    %c1_107 = arith.constant 1 : index
    %154 = memref.load %arg1[%c1_107] : memref<20xi32, #tpu.memory_space<smem>>
    %c0_i32_108 = arith.constant 0 : i32
    %c1_i32_109 = arith.constant 1 : i32
    %c0_i32_110 = arith.constant 0 : i32
    %155 = tpu.memref_slice %arg5[%154, %c0_i32_110] : memref<64x128xf32, #tpu.memory_space<any>> -> memref<1x128xf32, #tpu.memory_space<any>>
    %c1_i32_111 = arith.constant 1 : i32
    %c0_i32_112 = arith.constant 0 : i32
    %156 = tpu.memref_slice %arg7[%c0_i32_108, %c1_i32_111, %c0_i32_112] : memref<2x10x128xf32, #tpu.memory_space<vmem>> -> memref<1x1x128xf32, #tpu.memory_space<vmem>>
    %157 = tpu.memref_squeeze %156 : memref<1x1x128xf32, #tpu.memory_space<vmem>> -> memref<1x128xf32, #tpu.memory_space<vmem>>
    %158 = tpu.memref_slice %arg8[%c1_i32_109] : memref<20x!tpu.dma_semaphore, #tpu.memory_space<semaphore_mem>> -> memref<1x!tpu.dma_semaphore, #tpu.memory_space<semaphore_mem>>
    %159 = tpu.memref_squeeze %158 : memref<1x!tpu.dma_semaphore, #tpu.memory_space<semaphore_mem>> -> memref<!tpu.dma_semaphore, #tpu.memory_space<semaphore_mem>>
    tpu.wait_dma2 semaphore(%159 : memref<!tpu.dma_semaphore, #tpu.memory_space<semaphore_mem>>) src(%155 : memref<1x128xf32, #tpu.memory_space<any>>) dst(%157 : memref<1x128xf32, #tpu.memory_space<vmem>>)
    %c2_113 = arith.constant 2 : index
    %160 = memref.load %arg1[%c2_113] : memref<20xi32, #tpu.memory_space<smem>>
    %c0_i32_114 = arith.constant 0 : i32
    %c2_i32_115 = arith.constant 2 : i32
    %c0_i32_116 = arith.constant 0 : i32
    %161 = tpu.memref_slice %arg5[%160, %c0_i32_116] : memref<64x128xf32, #tpu.memory_space<any>> -> memref<1x128xf32, #tpu.memory_space<any>>
    %c2_i32_117 = arith.constant 2 : i32
    %c0_i32_118 = arith.constant 0 : i32
    %162 = tpu.memref_slice %arg7[%c0_i32_114, %c2_i32_117, %c0_i32_118] : memref<2x10x128xf32, #tpu.memory_space<vmem>> -> memref<1x1x128xf32, #tpu.memory_space<vmem>>
    %163 = tpu.memref_squeeze %162 : memref<1x1x128xf32, #tpu.memory_space<vmem>> -> memref<1x128xf32, #tpu.memory_space<vmem>>
    %164 = tpu.memref_slice %arg8[%c2_i32_115] : memref<20x!tpu.dma_semaphore, #tpu.memory_space<semaphore_mem>> -> memref<1x!tpu.dma_semaphore, #tpu.memory_space<semaphore_mem>>
    %165 = tpu.memref_squeeze %164 : memref<1x!tpu.dma_semaphore, #tpu.memory_space<semaphore_mem>> -> memref<!tpu.dma_semaphore, #tpu.memory_space<semaphore_mem>>
    tpu.wait_dma2 semaphore(%165 : memref<!tpu.dma_semaphore, #tpu.memory_space<semaphore_mem>>) src(%161 : memref<1x128xf32, #tpu.memory_space<any>>) dst(%163 : memref<1x128xf32, #tpu.memory_space<vmem>>)
    %c3_119 = arith.constant 3 : index
    %166 = memref.load %arg1[%c3_119] : memref<20xi32, #tpu.memory_space<smem>>
    %c0_i32_120 = arith.constant 0 : i32
    %c3_i32_121 = arith.constant 3 : i32
    %c0_i32_122 = arith.constant 0 : i32
    %167 = tpu.memref_slice %arg5[%166, %c0_i32_122] : memref<64x128xf32, #tpu.memory_space<any>> -> memref<1x128xf32, #tpu.memory_space<any>>
    %c3_i32_123 = arith.constant 3 : i32
    %c0_i32_124 = arith.constant 0 : i32
    %168 = tpu.memref_slice %arg7[%c0_i32_120, %c3_i32_123, %c0_i32_124] : memref<2x10x128xf32, #tpu.memory_space<vmem>> -> memref<1x1x128xf32, #tpu.memory_space<vmem>>
    %169 = tpu.memref_squeeze %168 : memref<1x1x128xf32, #tpu.memory_space<vmem>> -> memref<1x128xf32, #tpu.memory_space<vmem>>
    %170 = tpu.memref_slice %arg8[%c3_i32_121] : memref<20x!tpu.dma_semaphore, #tpu.memory_space<semaphore_mem>> -> memref<1x!tpu.dma_semaphore, #tpu.memory_space<semaphore_mem>>
    %171 = tpu.memref_squeeze %170 : memref<1x!tpu.dma_semaphore, #tpu.memory_space<semaphore_mem>> -> memref<!tpu.dma_semaphore, #tpu.memory_space<semaphore_mem>>
    tpu.wait_dma2 semaphore(%171 : memref<!tpu.dma_semaphore, #tpu.memory_space<semaphore_mem>>) src(%167 : memref<1x128xf32, #tpu.memory_space<any>>) dst(%169 : memref<1x128xf32, #tpu.memory_space<vmem>>)
    %c4_125 = arith.constant 4 : index
    %172 = memref.load %arg1[%c4_125] : memref<20xi32, #tpu.memory_space<smem>>
    %c0_i32_126 = arith.constant 0 : i32
    %c4_i32_127 = arith.constant 4 : i32
    %c0_i32_128 = arith.constant 0 : i32
    %173 = tpu.memref_slice %arg5[%172, %c0_i32_128] : memref<64x128xf32, #tpu.memory_space<any>> -> memref<1x128xf32, #tpu.memory_space<any>>
    %c4_i32_129 = arith.constant 4 : i32
    %c0_i32_130 = arith.constant 0 : i32
    %174 = tpu.memref_slice %arg7[%c0_i32_126, %c4_i32_129, %c0_i32_130] : memref<2x10x128xf32, #tpu.memory_space<vmem>> -> memref<1x1x128xf32, #tpu.memory_space<vmem>>
    %175 = tpu.memref_squeeze %174 : memref<1x1x128xf32, #tpu.memory_space<vmem>> -> memref<1x128xf32, #tpu.memory_space<vmem>>
    %176 = tpu.memref_slice %arg8[%c4_i32_127] : memref<20x!tpu.dma_semaphore, #tpu.memory_space<semaphore_mem>> -> memref<1x!tpu.dma_semaphore, #tpu.memory_space<semaphore_mem>>
    %177 = tpu.memref_squeeze %176 : memref<1x!tpu.dma_semaphore, #tpu.memory_space<semaphore_mem>> -> memref<!tpu.dma_semaphore, #tpu.memory_space<semaphore_mem>>
    tpu.wait_dma2 semaphore(%177 : memref<!tpu.dma_semaphore, #tpu.memory_space<semaphore_mem>>) src(%173 : memref<1x128xf32, #tpu.memory_space<any>>) dst(%175 : memref<1x128xf32, #tpu.memory_space<vmem>>)
    %c5_131 = arith.constant 5 : index
    %178 = memref.load %arg1[%c5_131] : memref<20xi32, #tpu.memory_space<smem>>
    %c0_i32_132 = arith.constant 0 : i32
    %c5_i32_133 = arith.constant 5 : i32
    %c0_i32_134 = arith.constant 0 : i32
    %179 = tpu.memref_slice %arg5[%178, %c0_i32_134] : memref<64x128xf32, #tpu.memory_space<any>> -> memref<1x128xf32, #tpu.memory_space<any>>
    %c5_i32_135 = arith.constant 5 : i32
    %c0_i32_136 = arith.constant 0 : i32
    %180 = tpu.memref_slice %arg7[%c0_i32_132, %c5_i32_135, %c0_i32_136] : memref<2x10x128xf32, #tpu.memory_space<vmem>> -> memref<1x1x128xf32, #tpu.memory_space<vmem>>
    %181 = tpu.memref_squeeze %180 : memref<1x1x128xf32, #tpu.memory_space<vmem>> -> memref<1x128xf32, #tpu.memory_space<vmem>>
    %182 = tpu.memref_slice %arg8[%c5_i32_133] : memref<20x!tpu.dma_semaphore, #tpu.memory_space<semaphore_mem>> -> memref<1x!tpu.dma_semaphore, #tpu.memory_space<semaphore_mem>>
    %183 = tpu.memref_squeeze %182 : memref<1x!tpu.dma_semaphore, #tpu.memory_space<semaphore_mem>> -> memref<!tpu.dma_semaphore, #tpu.memory_space<semaphore_mem>>
    tpu.wait_dma2 semaphore(%183 : memref<!tpu.dma_semaphore, #tpu.memory_space<semaphore_mem>>) src(%179 : memref<1x128xf32, #tpu.memory_space<any>>) dst(%181 : memref<1x128xf32, #tpu.memory_space<vmem>>)
    %c6_137 = arith.constant 6 : index
    %184 = memref.load %arg1[%c6_137] : memref<20xi32, #tpu.memory_space<smem>>
    %c0_i32_138 = arith.constant 0 : i32
    %c6_i32_139 = arith.constant 6 : i32
    %c0_i32_140 = arith.constant 0 : i32
    %185 = tpu.memref_slice %arg5[%184, %c0_i32_140] : memref<64x128xf32, #tpu.memory_space<any>> -> memref<1x128xf32, #tpu.memory_space<any>>
    %c6_i32_141 = arith.constant 6 : i32
    %c0_i32_142 = arith.constant 0 : i32
    %186 = tpu.memref_slice %arg7[%c0_i32_138, %c6_i32_141, %c0_i32_142] : memref<2x10x128xf32, #tpu.memory_space<vmem>> -> memref<1x1x128xf32, #tpu.memory_space<vmem>>
    %187 = tpu.memref_squeeze %186 : memref<1x1x128xf32, #tpu.memory_space<vmem>> -> memref<1x128xf32, #tpu.memory_space<vmem>>
    %188 = tpu.memref_slice %arg8[%c6_i32_139] : memref<20x!tpu.dma_semaphore, #tpu.memory_space<semaphore_mem>> -> memref<1x!tpu.dma_semaphore, #tpu.memory_space<semaphore_mem>>
    %189 = tpu.memref_squeeze %188 : memref<1x!tpu.dma_semaphore, #tpu.memory_space<semaphore_mem>> -> memref<!tpu.dma_semaphore, #tpu.memory_space<semaphore_mem>>
    tpu.wait_dma2 semaphore(%189 : memref<!tpu.dma_semaphore, #tpu.memory_space<semaphore_mem>>) src(%185 : memref<1x128xf32, #tpu.memory_space<any>>) dst(%187 : memref<1x128xf32, #tpu.memory_space<vmem>>)
    %c7_143 = arith.constant 7 : index
    %190 = memref.load %arg1[%c7_143] : memref<20xi32, #tpu.memory_space<smem>>
    %c0_i32_144 = arith.constant 0 : i32
    %c7_i32_145 = arith.constant 7 : i32
    %c0_i32_146 = arith.constant 0 : i32
    %191 = tpu.memref_slice %arg5[%190, %c0_i32_146] : memref<64x128xf32, #tpu.memory_space<any>> -> memref<1x128xf32, #tpu.memory_space<any>>
    %c7_i32_147 = arith.constant 7 : i32
    %c0_i32_148 = arith.constant 0 : i32
    %192 = tpu.memref_slice %arg7[%c0_i32_144, %c7_i32_147, %c0_i32_148] : memref<2x10x128xf32, #tpu.memory_space<vmem>> -> memref<1x1x128xf32, #tpu.memory_space<vmem>>
    %193 = tpu.memref_squeeze %192 : memref<1x1x128xf32, #tpu.memory_space<vmem>> -> memref<1x128xf32, #tpu.memory_space<vmem>>
    %194 = tpu.memref_slice %arg8[%c7_i32_145] : memref<20x!tpu.dma_semaphore, #tpu.memory_space<semaphore_mem>> -> memref<1x!tpu.dma_semaphore, #tpu.memory_space<semaphore_mem>>
    %195 = tpu.memref_squeeze %194 : memref<1x!tpu.dma_semaphore, #tpu.memory_space<semaphore_mem>> -> memref<!tpu.dma_semaphore, #tpu.memory_space<semaphore_mem>>
    tpu.wait_dma2 semaphore(%195 : memref<!tpu.dma_semaphore, #tpu.memory_space<semaphore_mem>>) src(%191 : memref<1x128xf32, #tpu.memory_space<any>>) dst(%193 : memref<1x128xf32, #tpu.memory_space<vmem>>)
    %c8_149 = arith.constant 8 : index
    %196 = memref.load %arg1[%c8_149] : memref<20xi32, #tpu.memory_space<smem>>
    %c0_i32_150 = arith.constant 0 : i32
    %c8_i32_151 = arith.constant 8 : i32
    %c0_i32_152 = arith.constant 0 : i32
    %197 = tpu.memref_slice %arg5[%196, %c0_i32_152] : memref<64x128xf32, #tpu.memory_space<any>> -> memref<1x128xf32, #tpu.memory_space<any>>
    %c8_i32_153 = arith.constant 8 : i32
    %c0_i32_154 = arith.constant 0 : i32
    %198 = tpu.memref_slice %arg7[%c0_i32_150, %c8_i32_153, %c0_i32_154] : memref<2x10x128xf32, #tpu.memory_space<vmem>> -> memref<1x1x128xf32, #tpu.memory_space<vmem>>
    %199 = tpu.memref_squeeze %198 : memref<1x1x128xf32, #tpu.memory_space<vmem>> -> memref<1x128xf32, #tpu.memory_space<vmem>>
    %200 = tpu.memref_slice %arg8[%c8_i32_151] : memref<20x!tpu.dma_semaphore, #tpu.memory_space<semaphore_mem>> -> memref<1x!tpu.dma_semaphore, #tpu.memory_space<semaphore_mem>>
    %201 = tpu.memref_squeeze %200 : memref<1x!tpu.dma_semaphore, #tpu.memory_space<semaphore_mem>> -> memref<!tpu.dma_semaphore, #tpu.memory_space<semaphore_mem>>
    tpu.wait_dma2 semaphore(%201 : memref<!tpu.dma_semaphore, #tpu.memory_space<semaphore_mem>>) src(%197 : memref<1x128xf32, #tpu.memory_space<any>>) dst(%199 : memref<1x128xf32, #tpu.memory_space<vmem>>)
    %c9_155 = arith.constant 9 : index
    %202 = memref.load %arg1[%c9_155] : memref<20xi32, #tpu.memory_space<smem>>
    %c0_i32_156 = arith.constant 0 : i32
    %c9_i32_157 = arith.constant 9 : i32
    %c0_i32_158 = arith.constant 0 : i32
    %203 = tpu.memref_slice %arg5[%202, %c0_i32_158] : memref<64x128xf32, #tpu.memory_space<any>> -> memref<1x128xf32, #tpu.memory_space<any>>
    %c9_i32_159 = arith.constant 9 : i32
    %c0_i32_160 = arith.constant 0 : i32
    %204 = tpu.memref_slice %arg7[%c0_i32_156, %c9_i32_159, %c0_i32_160] : memref<2x10x128xf32, #tpu.memory_space<vmem>> -> memref<1x1x128xf32, #tpu.memory_space<vmem>>
    %205 = tpu.memref_squeeze %204 : memref<1x1x128xf32, #tpu.memory_space<vmem>> -> memref<1x128xf32, #tpu.memory_space<vmem>>
    %206 = tpu.memref_slice %arg8[%c9_i32_157] : memref<20x!tpu.dma_semaphore, #tpu.memory_space<semaphore_mem>> -> memref<1x!tpu.dma_semaphore, #tpu.memory_space<semaphore_mem>>
    %207 = tpu.memref_squeeze %206 : memref<1x!tpu.dma_semaphore, #tpu.memory_space<semaphore_mem>> -> memref<!tpu.dma_semaphore, #tpu.memory_space<semaphore_mem>>
    tpu.wait_dma2 semaphore(%207 : memref<!tpu.dma_semaphore, #tpu.memory_space<semaphore_mem>>) src(%203 : memref<1x128xf32, #tpu.memory_space<any>>) dst(%205 : memref<1x128xf32, #tpu.memory_space<vmem>>)
    %c10_161 = arith.constant 10 : index
    %208 = memref.load %arg1[%c10_161] : memref<20xi32, #tpu.memory_space<smem>>
    %c1_i32_162 = arith.constant 1 : i32
    %c10_i32_163 = arith.constant 10 : i32
    %c0_i32_164 = arith.constant 0 : i32
    %209 = tpu.memref_slice %arg5[%208, %c0_i32_164] : memref<64x128xf32, #tpu.memory_space<any>> -> memref<1x128xf32, #tpu.memory_space<any>>
    %c0_i32_165 = arith.constant 0 : i32
    %c0_i32_166 = arith.constant 0 : i32
    %210 = tpu.memref_slice %arg7[%c1_i32_162, %c0_i32_165, %c0_i32_166] : memref<2x10x128xf32, #tpu.memory_space<vmem>> -> memref<1x1x128xf32, #tpu.memory_space<vmem>>
    %211 = tpu.memref_squeeze %210 : memref<1x1x128xf32, #tpu.memory_space<vmem>> -> memref<1x128xf32, #tpu.memory_space<vmem>>
    %212 = tpu.memref_slice %arg8[%c10_i32_163] : memref<20x!tpu.dma_semaphore, #tpu.memory_space<semaphore_mem>> -> memref<1x!tpu.dma_semaphore, #tpu.memory_space<semaphore_mem>>
    %213 = tpu.memref_squeeze %212 : memref<1x!tpu.dma_semaphore, #tpu.memory_space<semaphore_mem>> -> memref<!tpu.dma_semaphore, #tpu.memory_space<semaphore_mem>>
    tpu.wait_dma2 semaphore(%213 : memref<!tpu.dma_semaphore, #tpu.memory_space<semaphore_mem>>) src(%209 : memref<1x128xf32, #tpu.memory_space<any>>) dst(%211 : memref<1x128xf32, #tpu.memory_space<vmem>>)
    %c11_167 = arith.constant 11 : index
    %214 = memref.load %arg1[%c11_167] : memref<20xi32, #tpu.memory_space<smem>>
    %c1_i32_168 = arith.constant 1 : i32
    %c11_i32_169 = arith.constant 11 : i32
    %c0_i32_170 = arith.constant 0 : i32
    %215 = tpu.memref_slice %arg5[%214, %c0_i32_170] : memref<64x128xf32, #tpu.memory_space<any>> -> memref<1x128xf32, #tpu.memory_space<any>>
    %c1_i32_171 = arith.constant 1 : i32
    %c0_i32_172 = arith.constant 0 : i32
    %216 = tpu.memref_slice %arg7[%c1_i32_168, %c1_i32_171, %c0_i32_172] : memref<2x10x128xf32, #tpu.memory_space<vmem>> -> memref<1x1x128xf32, #tpu.memory_space<vmem>>
    %217 = tpu.memref_squeeze %216 : memref<1x1x128xf32, #tpu.memory_space<vmem>> -> memref<1x128xf32, #tpu.memory_space<vmem>>
    %218 = tpu.memref_slice %arg8[%c11_i32_169] : memref<20x!tpu.dma_semaphore, #tpu.memory_space<semaphore_mem>> -> memref<1x!tpu.dma_semaphore, #tpu.memory_space<semaphore_mem>>
    %219 = tpu.memref_squeeze %218 : memref<1x!tpu.dma_semaphore, #tpu.memory_space<semaphore_mem>> -> memref<!tpu.dma_semaphore, #tpu.memory_space<semaphore_mem>>
    tpu.wait_dma2 semaphore(%219 : memref<!tpu.dma_semaphore, #tpu.memory_space<semaphore_mem>>) src(%215 : memref<1x128xf32, #tpu.memory_space<any>>) dst(%217 : memref<1x128xf32, #tpu.memory_space<vmem>>)
    %c12_173 = arith.constant 12 : index
    %220 = memref.load %arg1[%c12_173] : memref<20xi32, #tpu.memory_space<smem>>
    %c1_i32_174 = arith.constant 1 : i32
    %c12_i32_175 = arith.constant 12 : i32
    %c0_i32_176 = arith.constant 0 : i32
    %221 = tpu.memref_slice %arg5[%220, %c0_i32_176] : memref<64x128xf32, #tpu.memory_space<any>> -> memref<1x128xf32, #tpu.memory_space<any>>
    %c2_i32_177 = arith.constant 2 : i32
    %c0_i32_178 = arith.constant 0 : i32
    %222 = tpu.memref_slice %arg7[%c1_i32_174, %c2_i32_177, %c0_i32_178] : memref<2x10x128xf32, #tpu.memory_space<vmem>> -> memref<1x1x128xf32, #tpu.memory_space<vmem>>
    %223 = tpu.memref_squeeze %222 : memref<1x1x128xf32, #tpu.memory_space<vmem>> -> memref<1x128xf32, #tpu.memory_space<vmem>>
    %224 = tpu.memref_slice %arg8[%c12_i32_175] : memref<20x!tpu.dma_semaphore, #tpu.memory_space<semaphore_mem>> -> memref<1x!tpu.dma_semaphore, #tpu.memory_space<semaphore_mem>>
    %225 = tpu.memref_squeeze %224 : memref<1x!tpu.dma_semaphore, #tpu.memory_space<semaphore_mem>> -> memref<!tpu.dma_semaphore, #tpu.memory_space<semaphore_mem>>
    tpu.wait_dma2 semaphore(%225 : memref<!tpu.dma_semaphore, #tpu.memory_space<semaphore_mem>>) src(%221 : memref<1x128xf32, #tpu.memory_space<any>>) dst(%223 : memref<1x128xf32, #tpu.memory_space<vmem>>)
    %c13_179 = arith.constant 13 : index
    %226 = memref.load %arg1[%c13_179] : memref<20xi32, #tpu.memory_space<smem>>
    %c1_i32_180 = arith.constant 1 : i32
    %c13_i32_181 = arith.constant 13 : i32
    %c0_i32_182 = arith.constant 0 : i32
    %227 = tpu.memref_slice %arg5[%226, %c0_i32_182] : memref<64x128xf32, #tpu.memory_space<any>> -> memref<1x128xf32, #tpu.memory_space<any>>
    %c3_i32_183 = arith.constant 3 : i32
    %c0_i32_184 = arith.constant 0 : i32
    %228 = tpu.memref_slice %arg7[%c1_i32_180, %c3_i32_183, %c0_i32_184] : memref<2x10x128xf32, #tpu.memory_space<vmem>> -> memref<1x1x128xf32, #tpu.memory_space<vmem>>
    %229 = tpu.memref_squeeze %228 : memref<1x1x128xf32, #tpu.memory_space<vmem>> -> memref<1x128xf32, #tpu.memory_space<vmem>>
    %230 = tpu.memref_slice %arg8[%c13_i32_181] : memref<20x!tpu.dma_semaphore, #tpu.memory_space<semaphore_mem>> -> memref<1x!tpu.dma_semaphore, #tpu.memory_space<semaphore_mem>>
    %231 = tpu.memref_squeeze %230 : memref<1x!tpu.dma_semaphore, #tpu.memory_space<semaphore_mem>> -> memref<!tpu.dma_semaphore, #tpu.memory_space<semaphore_mem>>
    tpu.wait_dma2 semaphore(%231 : memref<!tpu.dma_semaphore, #tpu.memory_space<semaphore_mem>>) src(%227 : memref<1x128xf32, #tpu.memory_space<any>>) dst(%229 : memref<1x128xf32, #tpu.memory_space<vmem>>)
    %c14_185 = arith.constant 14 : index
    %232 = memref.load %arg1[%c14_185] : memref<20xi32, #tpu.memory_space<smem>>
    %c1_i32_186 = arith.constant 1 : i32
    %c14_i32_187 = arith.constant 14 : i32
    %c0_i32_188 = arith.constant 0 : i32
    %233 = tpu.memref_slice %arg5[%232, %c0_i32_188] : memref<64x128xf32, #tpu.memory_space<any>> -> memref<1x128xf32, #tpu.memory_space<any>>
    %c4_i32_189 = arith.constant 4 : i32
    %c0_i32_190 = arith.constant 0 : i32
    %234 = tpu.memref_slice %arg7[%c1_i32_186, %c4_i32_189, %c0_i32_190] : memref<2x10x128xf32, #tpu.memory_space<vmem>> -> memref<1x1x128xf32, #tpu.memory_space<vmem>>
    %235 = tpu.memref_squeeze %234 : memref<1x1x128xf32, #tpu.memory_space<vmem>> -> memref<1x128xf32, #tpu.memory_space<vmem>>
    %236 = tpu.memref_slice %arg8[%c14_i32_187] : memref<20x!tpu.dma_semaphore, #tpu.memory_space<semaphore_mem>> -> memref<1x!tpu.dma_semaphore, #tpu.memory_space<semaphore_mem>>
    %237 = tpu.memref_squeeze %236 : memref<1x!tpu.dma_semaphore, #tpu.memory_space<semaphore_mem>> -> memref<!tpu.dma_semaphore, #tpu.memory_space<semaphore_mem>>
    tpu.wait_dma2 semaphore(%237 : memref<!tpu.dma_semaphore, #tpu.memory_space<semaphore_mem>>) src(%233 : memref<1x128xf32, #tpu.memory_space<any>>) dst(%235 : memref<1x128xf32, #tpu.memory_space<vmem>>)
    %c15_191 = arith.constant 15 : index
    %238 = memref.load %arg1[%c15_191] : memref<20xi32, #tpu.memory_space<smem>>
    %c1_i32_192 = arith.constant 1 : i32
    %c15_i32_193 = arith.constant 15 : i32
    %c0_i32_194 = arith.constant 0 : i32
    %239 = tpu.memref_slice %arg5[%238, %c0_i32_194] : memref<64x128xf32, #tpu.memory_space<any>> -> memref<1x128xf32, #tpu.memory_space<any>>
    %c5_i32_195 = arith.constant 5 : i32
    %c0_i32_196 = arith.constant 0 : i32
    %240 = tpu.memref_slice %arg7[%c1_i32_192, %c5_i32_195, %c0_i32_196] : memref<2x10x128xf32, #tpu.memory_space<vmem>> -> memref<1x1x128xf32, #tpu.memory_space<vmem>>
    %241 = tpu.memref_squeeze %240 : memref<1x1x128xf32, #tpu.memory_space<vmem>> -> memref<1x128xf32, #tpu.memory_space<vmem>>
    %242 = tpu.memref_slice %arg8[%c15_i32_193] : memref<20x!tpu.dma_semaphore, #tpu.memory_space<semaphore_mem>> -> memref<1x!tpu.dma_semaphore, #tpu.memory_space<semaphore_mem>>
    %243 = tpu.memref_squeeze %242 : memref<1x!tpu.dma_semaphore, #tpu.memory_space<semaphore_mem>> -> memref<!tpu.dma_semaphore, #tpu.memory_space<semaphore_mem>>
    tpu.wait_dma2 semaphore(%243 : memref<!tpu.dma_semaphore, #tpu.memory_space<semaphore_mem>>) src(%239 : memref<1x128xf32, #tpu.memory_space<any>>) dst(%241 : memref<1x128xf32, #tpu.memory_space<vmem>>)
    %c16_197 = arith.constant 16 : index
    %244 = memref.load %arg1[%c16_197] : memref<20xi32, #tpu.memory_space<smem>>
    %c1_i32_198 = arith.constant 1 : i32
    %c16_i32_199 = arith.constant 16 : i32
    %c0_i32_200 = arith.constant 0 : i32
    %245 = tpu.memref_slice %arg5[%244, %c0_i32_200] : memref<64x128xf32, #tpu.memory_space<any>> -> memref<1x128xf32, #tpu.memory_space<any>>
    %c6_i32_201 = arith.constant 6 : i32
    %c0_i32_202 = arith.constant 0 : i32
    %246 = tpu.memref_slice %arg7[%c1_i32_198, %c6_i32_201, %c0_i32_202] : memref<2x10x128xf32, #tpu.memory_space<vmem>> -> memref<1x1x128xf32, #tpu.memory_space<vmem>>
    %247 = tpu.memref_squeeze %246 : memref<1x1x128xf32, #tpu.memory_space<vmem>> -> memref<1x128xf32, #tpu.memory_space<vmem>>
    %248 = tpu.memref_slice %arg8[%c16_i32_199] : memref<20x!tpu.dma_semaphore, #tpu.memory_space<semaphore_mem>> -> memref<1x!tpu.dma_semaphore, #tpu.memory_space<semaphore_mem>>
    %249 = tpu.memref_squeeze %248 : memref<1x!tpu.dma_semaphore, #tpu.memory_space<semaphore_mem>> -> memref<!tpu.dma_semaphore, #tpu.memory_space<semaphore_mem>>
    tpu.wait_dma2 semaphore(%249 : memref<!tpu.dma_semaphore, #tpu.memory_space<semaphore_mem>>) src(%245 : memref<1x128xf32, #tpu.memory_space<any>>) dst(%247 : memref<1x128xf32, #tpu.memory_space<vmem>>)
    %c17_203 = arith.constant 17 : index
    %250 = memref.load %arg1[%c17_203] : memref<20xi32, #tpu.memory_space<smem>>
    %c1_i32_204 = arith.constant 1 : i32
    %c17_i32_205 = arith.constant 17 : i32
    %c0_i32_206 = arith.constant 0 : i32
    %251 = tpu.memref_slice %arg5[%250, %c0_i32_206] : memref<64x128xf32, #tpu.memory_space<any>> -> memref<1x128xf32, #tpu.memory_space<any>>
    %c7_i32_207 = arith.constant 7 : i32
    %c0_i32_208 = arith.constant 0 : i32
    %252 = tpu.memref_slice %arg7[%c1_i32_204, %c7_i32_207, %c0_i32_208] : memref<2x10x128xf32, #tpu.memory_space<vmem>> -> memref<1x1x128xf32, #tpu.memory_space<vmem>>
    %253 = tpu.memref_squeeze %252 : memref<1x1x128xf32, #tpu.memory_space<vmem>> -> memref<1x128xf32, #tpu.memory_space<vmem>>
    %254 = tpu.memref_slice %arg8[%c17_i32_205] : memref<20x!tpu.dma_semaphore, #tpu.memory_space<semaphore_mem>> -> memref<1x!tpu.dma_semaphore, #tpu.memory_space<semaphore_mem>>
    %255 = tpu.memref_squeeze %254 : memref<1x!tpu.dma_semaphore, #tpu.memory_space<semaphore_mem>> -> memref<!tpu.dma_semaphore, #tpu.memory_space<semaphore_mem>>
    tpu.wait_dma2 semaphore(%255 : memref<!tpu.dma_semaphore, #tpu.memory_space<semaphore_mem>>) src(%251 : memref<1x128xf32, #tpu.memory_space<any>>) dst(%253 : memref<1x128xf32, #tpu.memory_space<vmem>>)
    %c18_209 = arith.constant 18 : index
    %256 = memref.load %arg1[%c18_209] : memref<20xi32, #tpu.memory_space<smem>>
    %c1_i32_210 = arith.constant 1 : i32
    %c18_i32_211 = arith.constant 18 : i32
    %c0_i32_212 = arith.constant 0 : i32
    %257 = tpu.memref_slice %arg5[%256, %c0_i32_212] : memref<64x128xf32, #tpu.memory_space<any>> -> memref<1x128xf32, #tpu.memory_space<any>>
    %c8_i32_213 = arith.constant 8 : i32
    %c0_i32_214 = arith.constant 0 : i32
    %258 = tpu.memref_slice %arg7[%c1_i32_210, %c8_i32_213, %c0_i32_214] : memref<2x10x128xf32, #tpu.memory_space<vmem>> -> memref<1x1x128xf32, #tpu.memory_space<vmem>>
    %259 = tpu.memref_squeeze %258 : memref<1x1x128xf32, #tpu.memory_space<vmem>> -> memref<1x128xf32, #tpu.memory_space<vmem>>
    %260 = tpu.memref_slice %arg8[%c18_i32_211] : memref<20x!tpu.dma_semaphore, #tpu.memory_space<semaphore_mem>> -> memref<1x!tpu.dma_semaphore, #tpu.memory_space<semaphore_mem>>
    %261 = tpu.memref_squeeze %260 : memref<1x!tpu.dma_semaphore, #tpu.memory_space<semaphore_mem>> -> memref<!tpu.dma_semaphore, #tpu.memory_space<semaphore_mem>>
    tpu.wait_dma2 semaphore(%261 : memref<!tpu.dma_semaphore, #tpu.memory_space<semaphore_mem>>) src(%257 : memref<1x128xf32, #tpu.memory_space<any>>) dst(%259 : memref<1x128xf32, #tpu.memory_space<vmem>>)
    %c19_215 = arith.constant 19 : index
    %262 = memref.load %arg1[%c19_215] : memref<20xi32, #tpu.memory_space<smem>>
    %c1_i32_216 = arith.constant 1 : i32
    %c19_i32_217 = arith.constant 19 : i32
    %c0_i32_218 = arith.constant 0 : i32
    %263 = tpu.memref_slice %arg5[%262, %c0_i32_218] : memref<64x128xf32, #tpu.memory_space<any>> -> memref<1x128xf32, #tpu.memory_space<any>>
    %c9_i32_219 = arith.constant 9 : i32
    %c0_i32_220 = arith.constant 0 : i32
    %264 = tpu.memref_slice %arg7[%c1_i32_216, %c9_i32_219, %c0_i32_220] : memref<2x10x128xf32, #tpu.memory_space<vmem>> -> memref<1x1x128xf32, #tpu.memory_space<vmem>>
    %265 = tpu.memref_squeeze %264 : memref<1x1x128xf32, #tpu.memory_space<vmem>> -> memref<1x128xf32, #tpu.memory_space<vmem>>
    %266 = tpu.memref_slice %arg8[%c19_i32_217] : memref<20x!tpu.dma_semaphore, #tpu.memory_space<semaphore_mem>> -> memref<1x!tpu.dma_semaphore, #tpu.memory_space<semaphore_mem>>
    %267 = tpu.memref_squeeze %266 : memref<1x!tpu.dma_semaphore, #tpu.memory_space<semaphore_mem>> -> memref<!tpu.dma_semaphore, #tpu.memory_space<semaphore_mem>>
    tpu.wait_dma2 semaphore(%267 : memref<!tpu.dma_semaphore, #tpu.memory_space<semaphore_mem>>) src(%263 : memref<1x128xf32, #tpu.memory_space<any>>) dst(%265 : memref<1x128xf32, #tpu.memory_space<vmem>>)
    %c0_221 = arith.constant 0 : index
    %c0_222 = arith.constant 0 : index
    %c0_223 = arith.constant 0 : index
    %268 = vector.load %arg7[%c0_221, %c0_222, %c0_223] : memref<2x10x128xf32, #tpu.memory_space<vmem>>, vector<2x10x128xf32>
    %c0_224 = arith.constant 0 : index
    %c5_225 = arith.constant 5 : index
    %c0_226 = arith.constant 0 : index
    %269 = vector.load %arg6[%c0_224, %c5_225, %c0_226] : memref<2x15x128xf32, #tpu.memory_space<vmem>>, vector<2x10x128xf32>
    tpu.vector_store %arg6[%c0_224, %c5_225, %c0_226], %268 {strides = array<i32>} : memref<2x15x128xf32, #tpu.memory_space<vmem>>, vector<2x10x128xf32>,
    return
  }
  func.func @transform_0(%arg0: i32, %arg1: memref<20xi32, #tpu.memory_space<smem>>) -> (i32, i32) {
    %c0_i32 = arith.constant 0 : i32
    %c0_i32_0 = arith.constant 0 : i32
    %c0_i32_1 = arith.constant 0 : i32
    return %c0_i32, %c0_i32_0 : i32, i32
  }
  func.func @transform_1(%arg0: i32, %arg1: memref<20xi32, #tpu.memory_space<smem>>) -> (i32, i32) {
    %c0_i32 = arith.constant 0 : i32
    %c0_i32_0 = arith.constant 0 : i32
    %c0_i32_1 = arith.constant 0 : i32
    return %c0_i32, %c0_i32_0 : i32, i32
  }
  func.func @transform_2(%arg0: i32, %arg1: memref<20xi32, #tpu.memory_space<smem>>) -> (i32, i32) {
    %c0_i32 = arith.constant 0 : i32
    %c0_i32_0 = arith.constant 0 : i32
    %c0_i32_1 = arith.constant 0 : i32
    return %c0_i32, %c0_i32_0 : i32, i32
  }
  func.func @transform_4(%arg0: i32, %arg1: memref<20xi32, #tpu.memory_space<smem>>) -> (i32, i32, i32) {
    %c0_i32 = arith.constant 0 : i32
    %c0_i32_0 = arith.constant 0 : i32
    %c0_i32_1 = arith.constant 0 : i32
    %c0_i32_2 = arith.constant 0 : i32
    return %c0_i32, %c0_i32_0, %c0_i32_1 : i32, i32, i32
  }
}

</mosaic_0001>

<llo_original>
// kernel: tpu_custom_call.1
$region0: #{tpu_custom_call.1}
  #allocation0 [shape = 'u32[]', space=smem, size = 0x4, offset = 0x4, fixed_abs, tag = 'smem constant byte address 0x4 - core index']
  #allocation1 [shape = 'u32[72,128]{1,0:T(1,128)}', space=vmem, size = 0x9000, scoped, tag = 'internal scratch']
  #allocation2 [shape = 'f32[2,10,128]{2,1,0:T(8,128)}', space=vmem, size = 0x4000, scoped, tag = 'scratch operand']
  #allocation3 [shape = 's32[20]{0}', space=sflag, size = 0x50, scoped, tag = 'scratch operand']
  #allocation4 [shape = 's32[1]{0}', space=sflag, size = 0x4, scoped, tag = 'scoped memory for tpu_custom_call.1']
  #allocation5 [shape = 'u8[512]{0}', space=smem, size = 0x200, scoped, tag = 'prefetched SMEM operand 0']
  #allocation11 [shape = 's32[]', space=sflag, size = 0x4, offset = 0, fixed_abs, tag = 'sflag constant byte address 0x0 - dummy sync flag']
  #allocation12 [shape = 's32[]', space=sflag, size = 0x4, offset = 0, fixed_abs, tag = 'sflag constant byte address 0x0 - dummy sync flag']
  #allocation13 [shape = 'u32[]', space=smem, size = 0x4, offset = 0x44, fixed_abs, tag = 'smem constant byte address 0x44 - assertion arg 0']
  #allocation14 [shape = 'u32[]', space=smem, size = 0x4, offset = 0x48, fixed_abs, tag = 'smem constant byte address 0x48 - assertion arg 1']
  #allocation15 [shape = 's32[]', space=sflag, size = 0x4, offset = 0, fixed_abs, tag = 'sflag constant byte address 0x0 - dummy sync flag']
  #allocation16 [shape = 's32[]', space=sflag, size = 0x4, offset = 0, fixed_abs, tag = 'sflag constant byte address 0x0 - dummy sync flag']
  #allocation17 [shape = 's32[]', space=sflag, size = 0x4, offset = 0, fixed_abs, tag = 'sflag constant byte address 0x0 - dummy sync flag']
  #allocation18 [shape = 's32[]', space=sflag, size = 0x4, offset = 0, fixed_abs, tag = 'sflag constant byte address 0x0 - dummy sync flag']
  #allocation19 [shape = 's32[]', space=sflag, size = 0x4, offset = 0, fixed_abs, tag = 'sflag constant byte address 0x0 - dummy sync flag']
  #allocation20 [shape = 's32[]', space=sflag, size = 0x4, offset = 0, fixed_abs, tag = 'sflag constant byte address 0x0 - dummy sync flag']
  #allocation21 [shape = 's32[]', space=sflag, size = 0x4, offset = 0, fixed_abs, tag = 'sflag constant byte address 0x0 - dummy sync flag']
  #allocation22 [shape = 's32[]', space=sflag, size = 0x4, offset = 0, fixed_abs, tag = 'sflag constant byte address 0x0 - dummy sync flag']
  #allocation23 [shape = 's32[]', space=sflag, size = 0x4, offset = 0, fixed_abs, tag = 'sflag constant byte address 0x0 - dummy sync flag']
  #allocation24 [shape = 's32[]', space=sflag, size = 0x4, offset = 0, fixed_abs, tag = 'sflag constant byte address 0x0 - dummy sync flag']
  #allocation25 [shape = 's32[]', space=sflag, size = 0x4, offset = 0, fixed_abs, tag = 'sflag constant byte address 0x0 - dummy sync flag']
  #allocation26 [shape = 's32[]', space=sflag, size = 0x4, offset = 0, fixed_abs, tag = 'sflag constant byte address 0x0 - dummy sync flag']
  #allocation27 [shape = 's32[]', space=sflag, size = 0x4, offset = 0, fixed_abs, tag = 'sflag constant byte address 0x0 - dummy sync flag']
  #allocation28 [shape = 's32[]', space=sflag, size = 0x4, offset = 0, fixed_abs, tag = 'sflag constant byte address 0x0 - dummy sync flag']
  #allocation29 [shape = 's32[]', space=sflag, size = 0x4, offset = 0, fixed_abs, tag = 'sflag constant byte address 0x0 - dummy sync flag']
  #allocation30 [shape = 's32[]', space=sflag, size = 0x4, offset = 0, fixed_abs, tag = 'sflag constant byte address 0x0 - dummy sync flag']
  #allocation31 [shape = 's32[]', space=sflag, size = 0x4, offset = 0, fixed_abs, tag = 'sflag constant byte address 0x0 - dummy sync flag']
  #allocation32 [shape = 's32[]', space=sflag, size = 0x4, offset = 0, fixed_abs, tag = 'sflag constant byte address 0x0 - dummy sync flag']
  #allocation33 [shape = 's32[]', space=sflag, size = 0x4, offset = 0, fixed_abs, tag = 'sflag constant byte address 0x0 - dummy sync flag']
  #allocation34 [shape = 's32[]', space=sflag, size = 0x4, offset = 0, fixed_abs, tag = 'sflag constant byte address 0x0 - dummy sync flag']
  #allocation35 [shape = 's32[]', space=sflag, size = 0x4, offset = 0, fixed_abs, tag = 'sflag constant byte address 0x0 - dummy sync flag']
  #allocation36 [shape = 's32[]', space=sflag, size = 0x4, offset = 0, fixed_abs, tag = 'sflag constant byte address 0x0 - dummy sync flag']
  #allocation37 [shape = 's32[]', space=sflag, size = 0x4, offset = 0, fixed_abs, tag = 'sflag constant byte address 0x0 - dummy sync flag']
  #allocation38 [shape = 's32[]', space=sflag, size = 0x4, offset = 0, fixed_abs, tag = 'sflag constant byte address 0x0 - dummy sync flag']
  #allocation39 [shape = 's32[]', space=sflag, size = 0x4, offset = 0, fixed_abs, tag = 'sflag constant byte address 0x0 - dummy sync flag']
  #allocation40 [shape = 's32[]', space=sflag, size = 0x4, offset = 0, fixed_abs, tag = 'sflag constant byte address 0x0 - dummy sync flag']
  #allocation41 [shape = 's32[]', space=sflag, size = 0x4, offset = 0, fixed_abs, tag = 'sflag constant byte address 0x0 - dummy sync flag']
  #allocation42 [shape = 's32[]', space=sflag, size = 0x4, offset = 0, fixed_abs, tag = 'sflag constant byte address 0x0 - dummy sync flag']
  #allocation43 [shape = 's32[]', space=sflag, size = 0x4, offset = 0, fixed_abs, tag = 'sflag constant byte address 0x0 - dummy sync flag']
  #allocation44 [shape = 's32[]', space=sflag, size = 0x4, offset = 0, fixed_abs, tag = 'sflag constant byte address 0x0 - dummy sync flag']
  #allocation45 [shape = 's32[]', space=sflag, size = 0x4, offset = 0, fixed_abs, tag = 'sflag constant byte address 0x0 - dummy sync flag']
  #allocation46 [shape = 's32[]', space=sflag, size = 0x4, offset = 0, fixed_abs, tag = 'sflag constant byte address 0x0 - dummy sync flag']
  #allocation47 [shape = 's32[]', space=sflag, size = 0x4, offset = 0, fixed_abs, tag = 'sflag constant byte address 0x0 - dummy sync flag']
  #allocation48 [shape = 's32[]', space=sflag, size = 0x4, offset = 0, fixed_abs, tag = 'sflag constant byte address 0x0 - dummy sync flag']
  #allocation49 [shape = 's32[]', space=sflag, size = 0x4, offset = 0, fixed_abs, tag = 'sflag constant byte address 0x0 - dummy sync flag']
  #allocation50 [shape = 's32[]', space=sflag, size = 0x4, offset = 0, fixed_abs, tag = 'sflag constant byte address 0x0 - dummy sync flag']
  #allocation51 [shape = 's32[]', space=sflag, size = 0x4, offset = 0, fixed_abs, tag = 'sflag constant byte address 0x0 - dummy sync flag']
  #allocation52 [shape = 's32[]', space=sflag, size = 0x4, offset = 0, fixed_abs, tag = 'sflag constant byte address 0x0 - dummy sync flag']
  %s0 = inlined_call_operand.hbm [shape: s32[20], index: 0, kind: input, shape index: {}]
  %s1 = inlined_call_operand.hbm [shape: f32[2,256], index: 1, kind: input, shape index: {}]
  %s2 = inlined_call_operand.hbm [shape: bf16[256,640], index: 2, kind: input, shape index: {}]
  %s3 = inlined_call_operand.hbm [shape: f32[1,640], index: 3, kind: input, shape index: {}]
  %s4 = inlined_call_operand.hbm [shape: f32[64,128], index: 4, kind: input, shape index: {}]
  %s5 = inlined_call_operand.vmem [shape: f32[2,15,128], index: 5, kind: output, shape index: {}]
  %s6 = sld [smem:[#allocation0]]
  $region114: #{tpu_custom_call.1} parent=0
    _
  %s8 = ssub.s32 1, %s6
  %s9 = scalar_select 0, %s8, %s6
  %s11 = sshll.u32 %s0, 4
  %s12 = int_to_ptr.hbm [resolvable:$true] %s11
  %14 = dma.hbm_to_smem %s12, 16, [#allocation5], [#allocation4]
  %16 = dma.done [#allocation4], 16
  %17 = sfence
  $region1: #{tpu_custom_call.1} parent=0
    #allocation6 [shape = 'u8[2048]{0}', space=vmem, size = 0x800, scoped, tag = 'input window, operand 1, single buffered']
    #allocation7 [shape = 's32[1]{0}', space=sflag, size = 0x4, scoped, tag = 'scoped memory for tpu_custom_call.1']
    #allocation8 [shape = 'u8[327680]{0}', space=vmem, size = 0x50000, scoped, tag = 'input window, operand 2, single buffered']
    #allocation9 [shape = 's32[1]{0}', space=sflag, size = 0x4, scoped, tag = 'scoped memory for tpu_custom_call.1']
    #allocation10 [shape = 'u8[2560]{0}', space=vmem, size = 0xc00, scoped, tag = 'input window, operand 3, single buffered']
    %18 = vsyncpa [#allocation7], 0
    %19 = vsyncpa [#allocation9], 0
    // Predicated region
    $region2: #{tpu_custom_call.1} parent=1 // pred_check
      _
    $region3: #{tpu_custom_call.1} parent=1 // pred_check_branch
      %21 = sbr.rel (0) target = $region5
    $region4: #{tpu_custom_call.1} parent=1 // pred_region
      %23 = vsyncadd [#allocation7], 0
      %s25 = sshll.u32 %s1, 4
      %s26 = int_to_ptr.hbm [resolvable:$true] %s25
      %s27 = sshll.u32 [#allocation6], 4
      %s28 = int_to_ptr.vmem [resolvable:$true] %s27
      %30 = dma.hbm_to_vmem [thread:$0]  %s26, 64, %s28, [#allocation7]
    $region5: #{tpu_custom_call.1} parent=1 // pred_fallthru
      _
    // Predicated region
    $region6: #{tpu_custom_call.1} parent=1 // pred_check
      _
    $region7: #{tpu_custom_call.1} parent=1 // pred_check_branch
      %32 = sbr.rel (0) target = $region9
    $region8: #{tpu_custom_call.1} parent=1 // pred_region
      %34 = vsyncadd [#allocation9], 0
      %s35 = sshll.u32 %s2, 4
      %s36 = int_to_ptr.hbm [resolvable:$true] %s35
      %s37 = sshll.u32 [#allocation8], 4
      %s38 = int_to_ptr.vmem [resolvable:$true] %s37
      %43 = dma.hbm_to_vmem [thread:$0]  %s36, 10240, %s38, [#allocation9], 320, 320, 20
    $region9: #{tpu_custom_call.1} parent=1 // pred_fallthru
      _
    // Predicated region
    $region10: #{tpu_custom_call.1} parent=1 // pred_check
      _
    $region11: #{tpu_custom_call.1} parent=1 // pred_check_branch
      %45 = sbr.rel (0) target = $region13
    $region12: #{tpu_custom_call.1} parent=1 // pred_region
      %47 = vsyncadd [#allocation9], 0
      %s49 = sshll.u32 %s3, 4
      %s50 = int_to_ptr.hbm [resolvable:$true] %s49
      %s51 = sshll.u32 [#allocation10], 4
      %s52 = int_to_ptr.vmem [resolvable:$true] %s51
      %54 = dma.hbm_to_vmem [thread:$0]  %s50, 80, %s52, [#allocation9]
    $region13: #{tpu_custom_call.1} parent=1 // pred_fallthru
      _
    // Predicated region
    $region14: #{tpu_custom_call.1} parent=1 // pred_check
      _
    $region15: #{tpu_custom_call.1} parent=1 // pred_check_branch
      %56 = sbr.rel (0) target = $region17
    $region16: #{tpu_custom_call.1} parent=1 // pred_region
      %58 = dma.done [#allocation7], 64
    $region17: #{tpu_custom_call.1} parent=1 // pred_fallthru
      _
    // Predicated region
    $region18: #{tpu_custom_call.1} parent=1 // pred_check
      _
    $region19: #{tpu_custom_call.1} parent=1 // pred_check_branch
      %60 = sbr.rel (0) target = $region21
    $region20: #{tpu_custom_call.1} parent=1 // pred_region
      %62 = dma.done [#allocation9], 10240
    $region21: #{tpu_custom_call.1} parent=1 // pred_fallthru
      _
    // Predicated region
    $region22: #{tpu_custom_call.1} parent=1 // pred_check
      _
    $region23: #{tpu_custom_call.1} parent=1 // pred_check_branch
      %64 = sbr.rel (0) target = $region25
    $region24: #{tpu_custom_call.1} parent=1 // pred_region
      %66 = dma.done [#allocation9], 80
    $region25: #{tpu_custom_call.1} parent=1 // pred_fallthru
      _
    %s67 = sld [smem:[#allocation5]]
    %s68 = scalar_lea.hbm %s4, %s67
    // Predicated region
    $region26: #{tpu_custom_call.1} parent=1 // pred_check
      _
    $region27: #{tpu_custom_call.1} parent=1 // pred_check_branch
      %70 = sbr.rel target = $region29
    $region28: #{tpu_custom_call.1} parent=1 // pred_region
      %71 = sst [smem:[#allocation13]] [#allocation12]
      %72 = sst [smem:[#allocation14]] [#allocation11]
    $region29: #{tpu_custom_call.1} parent=1 // pred_fallthru
      _
    %74 = shalt.err (0)
    %s76 = sshll.u32 %s68, 4
    %s77 = int_to_ptr.hbm [resolvable:$true] %s76
    %s78 = sshll.u32 [#allocation2], 4
    %s79 = int_to_ptr.vmem [resolvable:$true] %s78
    %81 = dma.hbm_to_vmem [thread:$0]  %s77, 16, %s79, [#allocation3]
    %s82 = sld [smem:[#allocation5 + $0x1]]
    %s83 = scalar_lea.hbm %s4, %s82
    %s84 = scalar_lea.vmem [#allocation2], 1
    %s85 = scalar_lea.sflag [#allocation3], 1
    // Predicated region
    $region30: #{tpu_custom_call.1} parent=1 // pred_check
      _
    $region31: #{tpu_custom_call.1} parent=1 // pred_check_branch
      %87 = sbr.rel target = $region33
    $region32: #{tpu_custom_call.1} parent=1 // pred_region
      %88 = sst [smem:[#allocation13]] [#allocation16]
      %89 = sst [smem:[#allocation14]] [#allocation15]
    $region33: #{tpu_custom_call.1} parent=1 // pred_fallthru
      _
    %91 = shalt.err (0)
    %s93 = sshll.u32 %s83, 4
    %s94 = int_to_ptr.hbm [resolvable:$true] %s93
    %s95 = sshll.u32 %s84, 4
    %s96 = int_to_ptr.vmem [resolvable:$true] %s95
    %98 = dma.hbm_to_vmem [thread:$0]  %s94, 16, %s96, %s85
    %s99 = sld [smem:[#allocation5 + $0x2]]
    %s100 = scalar_lea.hbm %s4, %s99
    %s101 = scalar_lea.vmem [#allocation2], 2
    %s102 = scalar_lea.sflag [#allocation3], 2
    // Predicated region
    $region34: #{tpu_custom_call.1} parent=1 // pred_check
      _
    $region35: #{tpu_custom_call.1} parent=1 // pred_check_branch
      %104 = sbr.rel target = $region37
    $region36: #{tpu_custom_call.1} parent=1 // pred_region
      %105 = sst [smem:[#allocation13]] [#allocation18]
      %106 = sst [smem:[#allocation14]] [#allocation17]
    $region37: #{tpu_custom_call.1} parent=1 // pred_fallthru
      _
    %108 = shalt.err (0)
    %s110 = sshll.u32 %s100, 4
    %s111 = int_to_ptr.hbm [resolvable:$true] %s110
    %s112 = sshll.u32 %s101, 4
    %s113 = int_to_ptr.vmem [resolvable:$true] %s112
    %115 = dma.hbm_to_vmem [thread:$0]  %s111, 16, %s113, %s102
    %s116 = sld [smem:[#allocation5 + $0x3]]
    %s117 = scalar_lea.hbm %s4, %s116
    %s118 = scalar_lea.vmem [#allocation2], 3
    %s119 = scalar_lea.sflag [#allocation3], 3
    // Predicated region
    $region38: #{tpu_custom_call.1} parent=1 // pred_check
      _
    $region39: #{tpu_custom_call.1} parent=1 // pred_check_branch
      %121 = sbr.rel target = $region41
    $region40: #{tpu_custom_call.1} parent=1 // pred_region
      %122 = sst [smem:[#allocation13]] [#allocation20]
      %123 = sst [smem:[#allocation14]] [#allocation19]
    $region41: #{tpu_custom_call.1} parent=1 // pred_fallthru
      _
    %125 = shalt.err (0)
    %s127 = sshll.u32 %s117, 4
    %s128 = int_to_ptr.hbm [resolvable:$true] %s127
    %s129 = sshll.u32 %s118, 4
    %s130 = int_to_ptr.vmem [resolvable:$true] %s129
    %132 = dma.hbm_to_vmem [thread:$0]  %s128, 16, %s130, %s119
    %s133 = sld [smem:[#allocation5 + $0x4]]
    %s134 = scalar_lea.hbm %s4, %s133
    %s135 = scalar_lea.vmem [#allocation2], 4
    %s136 = scalar_lea.sflag [#allocation3], 4
    // Predicated region
    $region42: #{tpu_custom_call.1} parent=1 // pred_check
      _
    $region43: #{tpu_custom_call.1} parent=1 // pred_check_branch
      %138 = sbr.rel target = $region45
    $region44: #{tpu_custom_call.1} parent=1 // pred_region
      %139 = sst [smem:[#allocation13]] [#allocation22]
      %140 = sst [smem:[#allocation14]] [#allocation21]
    $region45: #{tpu_custom_call.1} parent=1 // pred_fallthru
      _
    %142 = shalt.err (0)
    %s144 = sshll.u32 %s134, 4
    %s145 = int_to_ptr.hbm [resolvable:$true] %s144
    %s146 = sshll.u32 %s135, 4
    %s147 = int_to_ptr.vmem [resolvable:$true] %s146
    %149 = dma.hbm_to_vmem [thread:$0]  %s145, 16, %s147, %s136
    %s150 = sld [smem:[#allocation5 + $0x5]]
    %s151 = scalar_lea.hbm %s4, %s150
    %s152 = scalar_lea.vmem [#allocation2], 5
    %s153 = scalar_lea.sflag [#allocation3], 5
    // Predicated region
    $region46: #{tpu_custom_call.1} parent=1 // pred_check
      _
    $region47: #{tpu_custom_call.1} parent=1 // pred_check_branch
      %155 = sbr.rel target = $region49
    $region48: #{tpu_custom_call.1} parent=1 // pred_region
      %156 = sst [smem:[#allocation13]] [#allocation24]
      %157 = sst [smem:[#allocation14]] [#allocation23]
    $region49: #{tpu_custom_call.1} parent=1 // pred_fallthru
      _
    %159 = shalt.err (0)
    %s161 = sshll.u32 %s151, 4
    %s162 = int_to_ptr.hbm [resolvable:$true] %s161
    %s163 = sshll.u32 %s152, 4
    %s164 = int_to_ptr.vmem [resolvable:$true] %s163
    %166 = dma.hbm_to_vmem [thread:$0]  %s162, 16, %s164, %s153
    %s167 = sld [smem:[#allocation5 + $0x6]]
    %s168 = scalar_lea.hbm %s4, %s167
    %s169 = scalar_lea.vmem [#allocation2], 6
    %s170 = scalar_lea.sflag [#allocation3], 6
    // Predicated region
    $region50: #{tpu_custom_call.1} parent=1 // pred_check
      _
    $region51: #{tpu_custom_call.1} parent=1 // pred_check_branch
      %172 = sbr.rel target = $region53
    $region52: #{tpu_custom_call.1} parent=1 // pred_region
      %173 = sst [smem:[#allocation13]] [#allocation26]
      %174 = sst [smem:[#allocation14]] [#allocation25]
    $region53: #{tpu_custom_call.1} parent=1 // pred_fallthru
      _
    %176 = shalt.err (0)
    %s178 = sshll.u32 %s168, 4
    %s179 = int_to_ptr.hbm [resolvable:$true] %s178
    %s180 = sshll.u32 %s169, 4
    %s181 = int_to_ptr.vmem [resolvable:$true] %s180
    %183 = dma.hbm_to_vmem [thread:$0]  %s179, 16, %s181, %s170
    %s184 = sld [smem:[#allocation5 + $0x7]]
    %s185 = scalar_lea.hbm %s4, %s184
    %s186 = scalar_lea.vmem [#allocation2], 7
    %s187 = scalar_lea.sflag [#allocation3], 7
    // Predicated region
    $region54: #{tpu_custom_call.1} parent=1 // pred_check
      _
    $region55: #{tpu_custom_call.1} parent=1 // pred_check_branch
      %189 = sbr.rel target = $region57
    $region56: #{tpu_custom_call.1} parent=1 // pred_region
      %190 = sst [smem:[#allocation13]] [#allocation28]
      %191 = sst [smem:[#allocation14]] [#allocation27]
    $region57: #{tpu_custom_call.1} parent=1 // pred_fallthru
      _
    %193 = shalt.err (0)
    %s195 = sshll.u32 %s185, 4
    %s196 = int_to_ptr.hbm [resolvable:$true] %s195
    %s197 = sshll.u32 %s186, 4
    %s198 = int_to_ptr.vmem [resolvable:$true] %s197
    %200 = dma.hbm_to_vmem [thread:$0]  %s196, 16, %s198, %s187
    %s201 = sld [smem:[#allocation5 + $0x8]]
    %s202 = scalar_lea.hbm %s4, %s201
    %s203 = scalar_lea.vmem [#allocation2], 8
    %s204 = scalar_lea.sflag [#allocation3], 8
    // Predicated region
    $region58: #{tpu_custom_call.1} parent=1 // pred_check
      _
    $region59: #{tpu_custom_call.1} parent=1 // pred_check_branch
      %206 = sbr.rel target = $region61
    $region60: #{tpu_custom_call.1} parent=1 // pred_region
      %207 = sst [smem:[#allocation13]] [#allocation30]
      %208 = sst [smem:[#allocation14]] [#allocation29]
    $region61: #{tpu_custom_call.1} parent=1 // pred_fallthru
      _
    %210 = shalt.err (0)
    %s212 = sshll.u32 %s202, 4
    %s213 = int_to_ptr.hbm [resolvable:$true] %s212
    %s214 = sshll.u32 %s203, 4
    %s215 = int_to_ptr.vmem [resolvable:$true] %s214
    %217 = dma.hbm_to_vmem [thread:$0]  %s213, 16, %s215, %s204
    %s218 = sld [smem:[#allocation5 + $0x9]]
    %s219 = scalar_lea.hbm %s4, %s218
    %s220 = scalar_lea.vmem [#allocation2], 9
    %s221 = scalar_lea.sflag [#allocation3], 9
    // Predicated region
    $region62: #{tpu_custom_call.1} parent=1 // pred_check
      _
    $region63: #{tpu_custom_call.1} parent=1 // pred_check_branch
      %223 = sbr.rel target = $region65
    $region64: #{tpu_custom_call.1} parent=1 // pred_region
      %224 = sst [smem:[#allocation13]] [#allocation32]
      %225 = sst [smem:[#allocation14]] [#allocation31]
    $region65: #{tpu_custom_call.1} parent=1 // pred_fallthru
      _
    %227 = shalt.err (0)
    %s229 = sshll.u32 %s219, 4
    %s230 = int_to_ptr.hbm [resolvable:$true] %s229
    %s231 = sshll.u32 %s220, 4
    %s232 = int_to_ptr.vmem [resolvable:$true] %s231
    %234 = dma.hbm_to_vmem [thread:$0]  %s230, 16, %s232, %s221
    %s235 = sld [smem:[#allocation5 + $0xa]]
    %s236 = scalar_lea.hbm %s4, %s235
    %s237 = scalar_lea.vmem [#allocation2], 16
    %s238 = scalar_lea.sflag [#allocation3], 10
    // Predicated region
    $region66: #{tpu_custom_call.1} parent=1 // pred_check
      _
    $region67: #{tpu_custom_call.1} parent=1 // pred_check_branch
      %240 = sbr.rel target = $region69
    $region68: #{tpu_custom_call.1} parent=1 // pred_region
      %241 = sst [smem:[#allocation13]] [#allocation34]
      %242 = sst [smem:[#allocation14]] [#allocation33]
    $region69: #{tpu_custom_call.1} parent=1 // pred_fallthru
      _
    %244 = shalt.err (0)
    %s246 = sshll.u32 %s236, 4
    %s247 = int_to_ptr.hbm [resolvable:$true] %s246
    %s248 = sshll.u32 %s237, 4
    %s249 = int_to_ptr.vmem [resolvable:$true] %s248
    %251 = dma.hbm_to_vmem [thread:$0]  %s247, 16, %s249, %s238
    %s252 = sld [smem:[#allocation5 + $0xb]]
    %s253 = scalar_lea.hbm %s4, %s252
    %s254 = scalar_lea.vmem [#allocation2], 17
    %s255 = scalar_lea.sflag [#allocation3], 11
    // Predicated region
    $region70: #{tpu_custom_call.1} parent=1 // pred_check
      _
    $region71: #{tpu_custom_call.1} parent=1 // pred_check_branch
      %257 = sbr.rel target = $region73
    $region72: #{tpu_custom_call.1} parent=1 // pred_region
      %258 = sst [smem:[#allocation13]] [#allocation36]
      %259 = sst [smem:[#allocation14]] [#allocation35]
    $region73: #{tpu_custom_call.1} parent=1 // pred_fallthru
      _
    %261 = shalt.err (0)
    %s263 = sshll.u32 %s253, 4
    %s264 = int_to_ptr.hbm [resolvable:$true] %s263
    %s265 = sshll.u32 %s254, 4
    %s266 = int_to_ptr.vmem [resolvable:$true] %s265
    %268 = dma.hbm_to_vmem [thread:$0]  %s264, 16, %s266, %s255
    %s269 = sld [smem:[#allocation5 + $0xc]]
    %s270 = scalar_lea.hbm %s4, %s269
    %s271 = scalar_lea.vmem [#allocation2], 18
    %s272 = scalar_lea.sflag [#allocation3], 12
    // Predicated region
    $region74: #{tpu_custom_call.1} parent=1 // pred_check
      _
    $region75: #{tpu_custom_call.1} parent=1 // pred_check_branch
      %274 = sbr.rel target = $region77
    $region76: #{tpu_custom_call.1} parent=1 // pred_region
      %275 = sst [smem:[#allocation13]] [#allocation38]
      %276 = sst [smem:[#allocation14]] [#allocation37]
    $region77: #{tpu_custom_call.1} parent=1 // pred_fallthru
      _
    %278 = shalt.err (0)
    %s280 = sshll.u32 %s270, 4
    %s281 = int_to_ptr.hbm [resolvable:$true] %s280
    %s282 = sshll.u32 %s271, 4
    %s283 = int_to_ptr.vmem [resolvable:$true] %s282
    %285 = dma.hbm_to_vmem [thread:$0]  %s281, 16, %s283, %s272
    %s286 = sld [smem:[#allocation5 + $0xd]]
    %s287 = scalar_lea.hbm %s4, %s286
    %s288 = scalar_lea.vmem [#allocation2], 19
    %s289 = scalar_lea.sflag [#allocation3], 13
    // Predicated region
    $region78: #{tpu_custom_call.1} parent=1 // pred_check
      _
    $region79: #{tpu_custom_call.1} parent=1 // pred_check_branch
      %291 = sbr.rel target = $region81
    $region80: #{tpu_custom_call.1} parent=1 // pred_region
      %292 = sst [smem:[#allocation13]] [#allocation40]
      %293 = sst [smem:[#allocation14]] [#allocation39]
    $region81: #{tpu_custom_call.1} parent=1 // pred_fallthru
      _
    %295 = shalt.err (0)
    %s297 = sshll.u32 %s287, 4
    %s298 = int_to_ptr.hbm [resolvable:$true] %s297
    %s299 = sshll.u32 %s288, 4
    %s300 = int_to_ptr.vmem [resolvable:$true] %s299
    %302 = dma.hbm_to_vmem [thread:$0]  %s298, 16, %s300, %s289
    %s303 = sld [smem:[#allocation5 + $0xe]]
    %s304 = scalar_lea.hbm %s4, %s303
    %s305 = scalar_lea.vmem [#allocation2], 20
    %s306 = scalar_lea.sflag [#allocation3], 14
    // Predicated region
    $region82: #{tpu_custom_call.1} parent=1 // pred_check
      _
    $region83: #{tpu_custom_call.1} parent=1 // pred_check_branch
      %308 = sbr.rel target = $region85
    $region84: #{tpu_custom_call.1} parent=1 // pred_region
      %309 = sst [smem:[#allocation13]] [#allocation42]
      %310 = sst [smem:[#allocation14]] [#allocation41]
    $region85: #{tpu_custom_call.1} parent=1 // pred_fallthru
      _
    %312 = shalt.err (0)
    %s314 = sshll.u32 %s304, 4
    %s315 = int_to_ptr.hbm [resolvable:$true] %s314
    %s316 = sshll.u32 %s305, 4
    %s317 = int_to_ptr.vmem [resolvable:$true] %s316
    %319 = dma.hbm_to_vmem [thread:$0]  %s315, 16, %s317, %s306
    %s320 = sld [smem:[#allocation5 + $0xf]]
    %s321 = scalar_lea.hbm %s4, %s320
    %s322 = scalar_lea.vmem [#allocation2], 21
    %s323 = scalar_lea.sflag [#allocation3], 15
    // Predicated region
    $region86: #{tpu_custom_call.1} parent=1 // pred_check
      _
    $region87: #{tpu_custom_call.1} parent=1 // pred_check_branch
      %325 = sbr.rel target = $region89
    $region88: #{tpu_custom_call.1} parent=1 // pred_region
      %326 = sst [smem:[#allocation13]] [#allocation44]
      %327 = sst [smem:[#allocation14]] [#allocation43]
    $region89: #{tpu_custom_call.1} parent=1 // pred_fallthru
      _
    %329 = shalt.err (0)
    %s331 = sshll.u32 %s321, 4
    %s332 = int_to_ptr.hbm [resolvable:$true] %s331
    %s333 = sshll.u32 %s322, 4
    %s334 = int_to_ptr.vmem [resolvable:$true] %s333
    %336 = dma.hbm_to_vmem [thread:$0]  %s332, 16, %s334, %s323
    %s337 = sld [smem:[#allocation5 + $0x10]]
    %s338 = scalar_lea.hbm %s4, %s337
    %s339 = scalar_lea.vmem [#allocation2], 22
    %s340 = scalar_lea.sflag [#allocation3], 16
    // Predicated region
    $region90: #{tpu_custom_call.1} parent=1 // pred_check
      _
    $region91: #{tpu_custom_call.1} parent=1 // pred_check_branch
      %342 = sbr.rel target = $region93
    $region92: #{tpu_custom_call.1} parent=1 // pred_region
      %343 = sst [smem:[#allocation13]] [#allocation46]
      %344 = sst [smem:[#allocation14]] [#allocation45]
    $region93: #{tpu_custom_call.1} parent=1 // pred_fallthru
      _
    %346 = shalt.err (0)
    %s348 = sshll.u32 %s338, 4
    %s349 = int_to_ptr.hbm [resolvable:$true] %s348
    %s350 = sshll.u32 %s339, 4
    %s351 = int_to_ptr.vmem [resolvable:$true] %s350
    %353 = dma.hbm_to_vmem [thread:$0]  %s349, 16, %s351, %s340
    %s354 = sld [smem:[#allocation5 + $0x11]]
    %s355 = scalar_lea.hbm %s4, %s354
    %s356 = scalar_lea.vmem [#allocation2], 23
    %s357 = scalar_lea.sflag [#allocation3], 17
    // Predicated region
    $region94: #{tpu_custom_call.1} parent=1 // pred_check
      _
    $region95: #{tpu_custom_call.1} parent=1 // pred_check_branch
      %359 = sbr.rel target = $region97
    $region96: #{tpu_custom_call.1} parent=1 // pred_region
      %360 = sst [smem:[#allocation13]] [#allocation48]
      %361 = sst [smem:[#allocation14]] [#allocation47]
    $region97: #{tpu_custom_call.1} parent=1 // pred_fallthru
      _
    %363 = shalt.err (0)
    %s365 = sshll.u32 %s355, 4
    %s366 = int_to_ptr.hbm [resolvable:$true] %s365
    %s367 = sshll.u32 %s356, 4
    %s368 = int_to_ptr.vmem [resolvable:$true] %s367
    %370 = dma.hbm_to_vmem [thread:$0]  %s366, 16, %s368, %s357
    %s371 = sld [smem:[#allocation5 + $0x12]]
    %s372 = scalar_lea.hbm %s4, %s371
    %s373 = scalar_lea.vmem [#allocation2], 24
    %s374 = scalar_lea.sflag [#allocation3], 18
    // Predicated region
    $region98: #{tpu_custom_call.1} parent=1 // pred_check
      _
    $region99: #{tpu_custom_call.1} parent=1 // pred_check_branch
      %376 = sbr.rel target = $region101
    $region100: #{tpu_custom_call.1} parent=1 // pred_region
      %377 = sst [smem:[#allocation13]] [#allocation50]
      %378 = sst [smem:[#allocation14]] [#allocation49]
    $region101: #{tpu_custom_call.1} parent=1 // pred_fallthru
      _
    %380 = shalt.err (0)
    %s382 = sshll.u32 %s372, 4
    %s383 = int_to_ptr.hbm [resolvable:$true] %s382
    %s384 = sshll.u32 %s373, 4
    %s385 = int_to_ptr.vmem [resolvable:$true] %s384
    %387 = dma.hbm_to_vmem [thread:$0]  %s383, 16, %s385, %s374
    %s388 = sld [smem:[#allocation5 + $0x13]]
    %s389 = scalar_lea.hbm %s4, %s388
    %s390 = scalar_lea.vmem [#allocation2], 25
    %s391 = scalar_lea.sflag [#allocation3], 19
    // Predicated region
    $region102: #{tpu_custom_call.1} parent=1 // pred_check
      _
    $region103: #{tpu_custom_call.1} parent=1 // pred_check_branch
      %393 = sbr.rel target = $region105
    $region104: #{tpu_custom_call.1} parent=1 // pred_region
      %394 = sst [smem:[#allocation13]] [#allocation52]
      %395 = sst [smem:[#allocation14]] [#allocation51]
    $region105: #{tpu_custom_call.1} parent=1 // pred_fallthru
      _
    %397 = shalt.err (0)
    %s399 = sshll.u32 %s389, 4
    %s400 = int_to_ptr.hbm [resolvable:$true] %s399
    %s401 = sshll.u32 %s390, 4
    %s402 = int_to_ptr.vmem [resolvable:$true] %s401
    %404 = dma.hbm_to_vmem [thread:$0]  %s400, 16, %s402, %s391
    %v405 = vld [vmem:[#allocation6] sm:$0xf]
    %407 = vst [vmem:[#allocation1] ss:$4 sm:$0xff] %v405
    %v408 = vld.sshfl [vmem:[#allocation1] sm:$0xff pattern:$0x73625140]
    %v409 = vld.sshfl [vmem:[#allocation1 + $0x8] sm:$0xff pattern:$0x73625140]
    %v412 = vpack.c.bf16 %v408, %v408
    %v413 = vpack.c.bf16 %v409, %v409
    %v414 = vld [vmem:[#allocation8] sm:$0xff]
    %v415 = vld [vmem:[#allocation8 + $0x8] sm:$0xff]
    %v416 = vld [vmem:[#allocation8 + $0x10] sm:$0xf]
    %v417 = vld [vmem:[#allocation8 + $0x14] sm:$0xff]
    %v418 = vld [vmem:[#allocation8 + $0x1c] sm:$0xff]
    %v419 = vld [vmem:[#allocation8 + $0x24] sm:$0xf]
    %v420 = vld [vmem:[#allocation8 + $0x28] sm:$0xff]
    %v421 = vld [vmem:[#allocation8 + $0x30] sm:$0xff]
    %v422 = vld [vmem:[#allocation8 + $0x38] sm:$0xf]
    %v423 = vld [vmem:[#allocation8 + $0x3c] sm:$0xff]
    %v424 = vld [vmem:[#allocation8 + $0x44] sm:$0xff]
    %v425 = vld [vmem:[#allocation8 + $0x4c] sm:$0xf]
    %v426 = vld [vmem:[#allocation8 + $0x50] sm:$0xff]
    %v427 = vld [vmem:[#allocation8 + $0x58] sm:$0xff]
    %v428 = vld [vmem:[#allocation8 + $0x60] sm:$0xf]
    %v429 = vld [vmem:[#allocation8 + $0x64] sm:$0xff]
    %v430 = vld [vmem:[#allocation8 + $0x6c] sm:$0xff]
    %v431 = vld [vmem:[#allocation8 + $0x74] sm:$0xf]
    %v432 = vld [vmem:[#allocation8 + $0x78] sm:$0xff]
    %v433 = vld [vmem:[#allocation8 + $0x80] sm:$0xff]
    %v434 = vld [vmem:[#allocation8 + $0x88] sm:$0xf]
    %v435 = vld [vmem:[#allocation8 + $0x8c] sm:$0xff]
    %v436 = vld [vmem:[#allocation8 + $0x94] sm:$0xff]
    %v437 = vld [vmem:[#allocation8 + $0x9c] sm:$0xf]
    %v438 = vld [vmem:[#allocation8 + $0xa0] sm:$0xff]
    %v439 = vld [vmem:[#allocation8 + $0xa8] sm:$0xff]
    %v440 = vld [vmem:[#allocation8 + $0xb0] sm:$0xf]
    %v441 = vld [vmem:[#allocation8 + $0xb4] sm:$0xff]
    %v442 = vld [vmem:[#allocation8 + $0xbc] sm:$0xff]
    %v443 = vld [vmem:[#allocation8 + $0xc4] sm:$0xf]
    %v444 = vld [vmem:[#allocation8 + $0xc8] sm:$0xff]
    %v445 = vld [vmem:[#allocation8 + $0xd0] sm:$0xff]
    %v446 = vld [vmem:[#allocation8 + $0xd8] sm:$0xf]
    %v447 = vld [vmem:[#allocation8 + $0xdc] sm:$0xff]
    %v448 = vld [vmem:[#allocation8 + $0xe4] sm:$0xff]
    %v449 = vld [vmem:[#allocation8 + $0xec] sm:$0xf]
    %v450 = vld [vmem:[#allocation8 + $0xf0] sm:$0xff]
    %v451 = vld [vmem:[#allocation8 + $0xf8] sm:$0xff]
    %v452 = vld [vmem:[#allocation8 + $0x100] sm:$0xf]
    %v453 = vld [vmem:[#allocation8 + $0x104] sm:$0xff]
    %v454 = vld [vmem:[#allocation8 + $0x10c] sm:$0xff]
    %v455 = vld [vmem:[#allocation8 + $0x114] sm:$0xf]
    %v456 = vld [vmem:[#allocation8 + $0x118] sm:$0xff]
    %v457 = vld [vmem:[#allocation8 + $0x120] sm:$0xff]
    %v458 = vld [vmem:[#allocation8 + $0x128] sm:$0xf]
    %v459 = vld [vmem:[#allocation8 + $0x12c] sm:$0xff]
    %v460 = vld [vmem:[#allocation8 + $0x134] sm:$0xff]
    %v461 = vld [vmem:[#allocation8 + $0x13c] sm:$0xf]
    %v462 = vld [vmem:[#allocation8 + $0x140] sm:$0xff]
    %v463 = vld [vmem:[#allocation8 + $0x148] sm:$0xff]
    %v464 = vld [vmem:[#allocation8 + $0x150] sm:$0xf]
    %v465 = vld [vmem:[#allocation8 + $0x154] sm:$0xff]
    %v466 = vld [vmem:[#allocation8 + $0x15c] sm:$0xff]
    %v467 = vld [vmem:[#allocation8 + $0x164] sm:$0xf]
    %v468 = vld [vmem:[#allocation8 + $0x168] sm:$0xff]
    %v469 = vld [vmem:[#allocation8 + $0x170] sm:$0xff]
    %v470 = vld [vmem:[#allocation8 + $0x178] sm:$0xf]
    %v471 = vld [vmem:[#allocation8 + $0x17c] sm:$0xff]
    %v472 = vld [vmem:[#allocation8 + $0x184] sm:$0xff]
    %v473 = vld [vmem:[#allocation8 + $0x18c] sm:$0xf]
    %v474 = vld [vmem:[#allocation8 + $0x190] sm:$0xff]
    %v475 = vld [vmem:[#allocation8 + $0x198] sm:$0xff]
    %v476 = vld [vmem:[#allocation8 + $0x1a0] sm:$0xf]
    %v477 = vld [vmem:[#allocation8 + $0x1a4] sm:$0xff]
    %v478 = vld [vmem:[#allocation8 + $0x1ac] sm:$0xff]
    %v479 = vld [vmem:[#allocation8 + $0x1b4] sm:$0xf]
    %v480 = vld [vmem:[#allocation8 + $0x1b8] sm:$0xff]
    %v481 = vld [vmem:[#allocation8 + $0x1c0] sm:$0xff]
    %v482 = vld [vmem:[#allocation8 + $0x1c8] sm:$0xf]
    %v483 = vld [vmem:[#allocation8 + $0x1cc] sm:$0xff]
    %v484 = vld [vmem:[#allocation8 + $0x1d4] sm:$0xff]
    %v485 = vld [vmem:[#allocation8 + $0x1dc] sm:$0xf]
    %v486 = vld [vmem:[#allocation8 + $0x1e0] sm:$0xff]
    %v487 = vld [vmem:[#allocation8 + $0x1e8] sm:$0xff]
    %v488 = vld [vmem:[#allocation8 + $0x1f0] sm:$0xf]
    %v489 = vld [vmem:[#allocation8 + $0x1f4] sm:$0xff]
    %v490 = vld [vmem:[#allocation8 + $0x1fc] sm:$0xff]
    %v491 = vld [vmem:[#allocation8 + $0x204] sm:$0xf]
    %v492 = vld [vmem:[#allocation8 + $0x208] sm:$0xff]
    %v493 = vld [vmem:[#allocation8 + $0x210] sm:$0xff]
    %v494 = vld [vmem:[#allocation8 + $0x218] sm:$0xf]
    %v495 = vld [vmem:[#allocation8 + $0x21c] sm:$0xff]
    %v496 = vld [vmem:[#allocation8 + $0x224] sm:$0xff]
    %v497 = vld [vmem:[#allocation8 + $0x22c] sm:$0xf]
    %v498 = vld [vmem:[#allocation8 + $0x230] sm:$0xff]
    %v499 = vld [vmem:[#allocation8 + $0x238] sm:$0xff]
    %v500 = vld [vmem:[#allocation8 + $0x240] sm:$0xf]
    %v501 = vld [vmem:[#allocation8 + $0x244] sm:$0xff]
    %v502 = vld [vmem:[#allocation8 + $0x24c] sm:$0xff]
    %v503 = vld [vmem:[#allocation8 + $0x254] sm:$0xf]
    %v504 = vld [vmem:[#allocation8 + $0x258] sm:$0xff]
    %v505 = vld [vmem:[#allocation8 + $0x260] sm:$0xff]
    %v506 = vld [vmem:[#allocation8 + $0x268] sm:$0xf]
    %v507 = vld [vmem:[#allocation8 + $0x26c] sm:$0xff]
    %v508 = vld [vmem:[#allocation8 + $0x274] sm:$0xff]
    %v509 = vld [vmem:[#allocation8 + $0x27c] sm:$0xf]
    %v510 = vld [vmem:[#allocation10] sm:$0x1f]
    %v512 = vperm.slane %v510, 0
    %v513 = vperm.slane %v510, 1
    %v514 = vperm.slane %v510, 2
    %v515 = vperm.slane %v510, 3
    %v516 = vperm.slane %v510, 4
    %v618 = vunpack.c.l.b16 %v414
    %v619 = vunpack.c.h.b16 %v414
    %v620 = vunpack.c.l.b16 %v415
    %v621 = vunpack.c.h.b16 %v415
    %v622 = vunpack.c.l.b16 %v416
    %v623 = vunpack.c.l.b16 %v417
    %v624 = vunpack.c.h.b16 %v417
    %v625 = vunpack.c.l.b16 %v418
    %v626 = vunpack.c.h.b16 %v418
    %v627 = vunpack.c.l.b16 %v419
    %v628 = vunpack.c.l.b16 %v420
    %v629 = vunpack.c.h.b16 %v420
    %v630 = vunpack.c.l.b16 %v421
    %v631 = vunpack.c.h.b16 %v421
    %v632 = vunpack.c.l.b16 %v422
    %v633 = vunpack.c.l.b16 %v423
    %v634 = vunpack.c.h.b16 %v423
    %v635 = vunpack.c.l.b16 %v424
    %v636 = vunpack.c.h.b16 %v424
    %v637 = vunpack.c.l.b16 %v425
    %v638 = vunpack.c.l.b16 %v426
    %v639 = vunpack.c.h.b16 %v426
    %v640 = vunpack.c.l.b16 %v427
    %v641 = vunpack.c.h.b16 %v427
    %v642 = vunpack.c.l.b16 %v428
    %v643 = vunpack.c.l.b16 %v429
    %v644 = vunpack.c.h.b16 %v429
    %v645 = vunpack.c.l.b16 %v430
    %v646 = vunpack.c.h.b16 %v430
    %v647 = vunpack.c.l.b16 %v431
    %v648 = vunpack.c.l.b16 %v432
    %v649 = vunpack.c.h.b16 %v432
    %v650 = vunpack.c.l.b16 %v433
    %v651 = vunpack.c.h.b16 %v433
    %v652 = vunpack.c.l.b16 %v434
    %v653 = vunpack.c.l.b16 %v435
    %v654 = vunpack.c.h.b16 %v435
    %v655 = vunpack.c.l.b16 %v436
    %v656 = vunpack.c.h.b16 %v436
    %v657 = vunpack.c.l.b16 %v437
    %v658 = vunpack.c.l.b16 %v438
    %v659 = vunpack.c.h.b16 %v438
    %v660 = vunpack.c.l.b16 %v439
    %v661 = vunpack.c.h.b16 %v439
    %v662 = vunpack.c.l.b16 %v440
    %v663 = vunpack.c.l.b16 %v441
    %v664 = vunpack.c.h.b16 %v441
    %v665 = vunpack.c.l.b16 %v442
    %v666 = vunpack.c.h.b16 %v442
    %v667 = vunpack.c.l.b16 %v443
    %v668 = vunpack.c.l.b16 %v444
    %v669 = vunpack.c.h.b16 %v444
    %v670 = vunpack.c.l.b16 %v445
    %v671 = vunpack.c.h.b16 %v445
    %v672 = vunpack.c.l.b16 %v446
    %v673 = vunpack.c.l.b16 %v447
    %v674 = vunpack.c.h.b16 %v447
    %v675 = vunpack.c.l.b16 %v448
    %v676 = vunpack.c.h.b16 %v448
    %v677 = vunpack.c.l.b16 %v449
    %v678 = vunpack.c.l.b16 %v450
    %v679 = vunpack.c.h.b16 %v450
    %v680 = vunpack.c.l.b16 %v451
    %v681 = vunpack.c.h.b16 %v451
    %v682 = vunpack.c.l.b16 %v452
    %v683 = vunpack.c.l.b16 %v453
    %v684 = vunpack.c.h.b16 %v453
    %v685 = vunpack.c.l.b16 %v454
    %v686 = vunpack.c.h.b16 %v454
    %v687 = vunpack.c.l.b16 %v455
    %v688 = vunpack.c.l.b16 %v456
    %v689 = vunpack.c.h.b16 %v456
    %v690 = vunpack.c.l.b16 %v457
    %v691 = vunpack.c.h.b16 %v457
    %v692 = vunpack.c.l.b16 %v458
    %v693 = vunpack.c.l.b16 %v459
    %v694 = vunpack.c.h.b16 %v459
    %v695 = vunpack.c.l.b16 %v460
    %v696 = vunpack.c.h.b16 %v460
    %v697 = vunpack.c.l.b16 %v461
    %v698 = vunpack.c.l.b16 %v462
    %v699 = vunpack.c.h.b16 %v462
    %v700 = vunpack.c.l.b16 %v463
    %v701 = vunpack.c.h.b16 %v463
    %v702 = vunpack.c.l.b16 %v464
    %v703 = vunpack.c.l.b16 %v465
    %v704 = vunpack.c.h.b16 %v465
    %v705 = vunpack.c.l.b16 %v466
    %v706 = vunpack.c.h.b16 %v466
    %v707 = vunpack.c.l.b16 %v467
    %v708 = vunpack.c.l.b16 %v468
    %v709 = vunpack.c.h.b16 %v468
    %v710 = vunpack.c.l.b16 %v469
    %v711 = vunpack.c.h.b16 %v469
    %v712 = vunpack.c.l.b16 %v470
    %v713 = vunpack.c.l.b16 %v471
    %v714 = vunpack.c.h.b16 %v471
    %v715 = vunpack.c.l.b16 %v472
    %v716 = vunpack.c.h.b16 %v472
    %v717 = vunpack.c.l.b16 %v473
    %v718 = vunpack.c.l.b16 %v474
    %v719 = vunpack.c.h.b16 %v474
    %v720 = vunpack.c.l.b16 %v475
    %v721 = vunpack.c.h.b16 %v475
    %v722 = vunpack.c.l.b16 %v476
    %v723 = vunpack.c.l.b16 %v477
    %v724 = vunpack.c.h.b16 %v477
    %v725 = vunpack.c.l.b16 %v478
    %v726 = vunpack.c.h.b16 %v478
    %v727 = vunpack.c.l.b16 %v479
    %v728 = vunpack.c.l.b16 %v480
    %v729 = vunpack.c.h.b16 %v480
    %v730 = vunpack.c.l.b16 %v481
    %v731 = vunpack.c.h.b16 %v481
    %v732 = vunpack.c.l.b16 %v482
    %v733 = vunpack.c.l.b16 %v483
    %v734 = vunpack.c.h.b16 %v483
    %v735 = vunpack.c.l.b16 %v484
    %v736 = vunpack.c.h.b16 %v484
    %v737 = vunpack.c.l.b16 %v485
    %v738 = vunpack.c.l.b16 %v486
    %v739 = vunpack.c.h.b16 %v486
    %v740 = vunpack.c.l.b16 %v487
    %v741 = vunpack.c.h.b16 %v487
    %v742 = vunpack.c.l.b16 %v488
    %v743 = vunpack.c.l.b16 %v489
    %v744 = vunpack.c.h.b16 %v489
    %v745 = vunpack.c.l.b16 %v490
    %v746 = vunpack.c.h.b16 %v490
    %v747 = vunpack.c.l.b16 %v491
    %v748 = vunpack.c.l.b16 %v492
    %v749 = vunpack.c.h.b16 %v492
    %v750 = vunpack.c.l.b16 %v493
    %v751 = vunpack.c.h.b16 %v493
    %v752 = vunpack.c.l.b16 %v494
    %v753 = vunpack.c.l.b16 %v495
    %v754 = vunpack.c.h.b16 %v495
    %v755 = vunpack.c.l.b16 %v496
    %v756 = vunpack.c.h.b16 %v496
    %v757 = vunpack.c.l.b16 %v497
    %v758 = vunpack.c.l.b16 %v498
    %v759 = vunpack.c.h.b16 %v498
    %v760 = vunpack.c.l.b16 %v499
    %v761 = vunpack.c.h.b16 %v499
    %v762 = vunpack.c.l.b16 %v500
    %v763 = vunpack.c.l.b16 %v501
    %v764 = vunpack.c.h.b16 %v501
    %v765 = vunpack.c.l.b16 %v502
    %v766 = vunpack.c.h.b16 %v502
    %v767 = vunpack.c.l.b16 %v503
    %v768 = vunpack.c.l.b16 %v504
    %v769 = vunpack.c.h.b16 %v504
    %v770 = vunpack.c.l.b16 %v505
    %v771 = vunpack.c.h.b16 %v505
    %v772 = vunpack.c.l.b16 %v506
    %v773 = vunpack.c.l.b16 %v507
    %v774 = vunpack.c.h.b16 %v507
    %v775 = vunpack.c.l.b16 %v508
    %v776 = vunpack.c.h.b16 %v508
    %v777 = vunpack.c.l.b16 %v509
    %v778 = vpack.c.b16 %v623, %v618
    %v779 = vpack.c.b16 %v624, %v619
    %v780 = vpack.c.b16 %v625, %v620
    %v781 = vpack.c.b16 %v626, %v621
    %v782 = vpack.c.b16 %v627, %v622
    %v783 = vpack.c.b16 %v633, %v628
    %v784 = vpack.c.b16 %v634, %v629
    %v785 = vpack.c.b16 %v635, %v630
    %v786 = vpack.c.b16 %v636, %v631
    %v787 = vpack.c.b16 %v637, %v632
    %v788 = vpack.c.b16 %v643, %v638
    %v789 = vpack.c.b16 %v644, %v639
    %v790 = vpack.c.b16 %v645, %v640
    %v791 = vpack.c.b16 %v646, %v641
    %v792 = vpack.c.b16 %v647, %v642
    %v793 = vpack.c.b16 %v653, %v648
    %v794 = vpack.c.b16 %v654, %v649
    %v795 = vpack.c.b16 %v655, %v650
    %v796 = vpack.c.b16 %v656, %v651
    %v797 = vpack.c.b16 %v657, %v652
    %v798 = vpack.c.b16 %v663, %v658
    %v799 = vpack.c.b16 %v664, %v659
    %v800 = vpack.c.b16 %v665, %v660
    %v801 = vpack.c.b16 %v666, %v661
    %v802 = vpack.c.b16 %v667, %v662
    %v803 = vpack.c.b16 %v673, %v668
    %v804 = vpack.c.b16 %v674, %v669
    %v805 = vpack.c.b16 %v675, %v670
    %v806 = vpack.c.b16 %v676, %v671
    %v807 = vpack.c.b16 %v677, %v672
    %v808 = vpack.c.b16 %v683, %v678
    %v809 = vpack.c.b16 %v684, %v679
    %v810 = vpack.c.b16 %v685, %v680
    %v811 = vpack.c.b16 %v686, %v681
    %v812 = vpack.c.b16 %v687, %v682
    %v813 = vpack.c.b16 %v693, %v688
    %v814 = vpack.c.b16 %v694, %v689
    %v815 = vpack.c.b16 %v695, %v690
    %v816 = vpack.c.b16 %v696, %v691
    %v817 = vpack.c.b16 %v697, %v692
    %v818 = vpack.c.b16 %v703, %v698
    %v819 = vpack.c.b16 %v704, %v699
    %v820 = vpack.c.b16 %v705, %v700
    %v821 = vpack.c.b16 %v706, %v701
    %v822 = vpack.c.b16 %v707, %v702
    %v823 = vpack.c.b16 %v713, %v708
    %v824 = vpack.c.b16 %v714, %v709
    %v825 = vpack.c.b16 %v715, %v710
    %v826 = vpack.c.b16 %v716, %v711
    %v827 = vpack.c.b16 %v717, %v712
    %v828 = vpack.c.b16 %v723, %v718
    %v829 = vpack.c.b16 %v724, %v719
    %v830 = vpack.c.b16 %v725, %v720
    %v831 = vpack.c.b16 %v726, %v721
    %v832 = vpack.c.b16 %v727, %v722
    %v833 = vpack.c.b16 %v733, %v728
    %v834 = vpack.c.b16 %v734, %v729
    %v835 = vpack.c.b16 %v735, %v730
    %v836 = vpack.c.b16 %v736, %v731
    %v837 = vpack.c.b16 %v737, %v732
    %v838 = vpack.c.b16 %v743, %v738
    %v839 = vpack.c.b16 %v744, %v739
    %v840 = vpack.c.b16 %v745, %v740
    %v841 = vpack.c.b16 %v746, %v741
    %v842 = vpack.c.b16 %v747, %v742
    %v843 = vpack.c.b16 %v753, %v748
    %v844 = vpack.c.b16 %v754, %v749
    %v845 = vpack.c.b16 %v755, %v750
    %v846 = vpack.c.b16 %v756, %v751
    %v847 = vpack.c.b16 %v757, %v752
    %v848 = vpack.c.b16 %v763, %v758
    %v849 = vpack.c.b16 %v764, %v759
    %v850 = vpack.c.b16 %v765, %v760
    %v851 = vpack.c.b16 %v766, %v761
    %v852 = vpack.c.b16 %v767, %v762
    %v853 = vpack.c.b16 %v773, %v768
    %v854 = vpack.c.b16 %v774, %v769
    %v855 = vpack.c.b16 %v775, %v770
    %v856 = vpack.c.b16 %v776, %v771
    %v857 = vpack.c.b16 %v777, %v772
    %938 = vmatpush.bf16.msra.mxu0 %v813
    %939 = vmatpush.bf16.msra.mxu0 %v808
    %940 = vmatpush.bf16.msra.mxu0 %v803
    %941 = vmatpush.bf16.msra.mxu0 %v798
    %942 = vmatpush.bf16.msra.mxu0 %v793
    %943 = vmatpush.bf16.msra.mxu0 %v788
    %944 = vmatpush.bf16.msra.mxu0 %v783
    %945 = vmatpush.bf16.msra.mxu0 %v778
    %946 = vmatmul.bf16.gmra.mxu0 %v412
    %v947 = vpop.f32.mrf.mxu0
    %v948 = vadd.f32 %v512, %v947
    %v949 = vpop.f32.mrf.mxu0
    %950 = vdwg.mxu0
    %951 = vmatpush.bf16.msra.mxu0 %v853
    %952 = vmatpush.bf16.msra.mxu0 %v848
    %953 = vmatpush.bf16.msra.mxu0 %v843
    %954 = vmatpush.bf16.msra.mxu0 %v838
    %955 = vmatpush.bf16.msra.mxu0 %v833
    %956 = vmatpush.bf16.msra.mxu0 %v828
    %957 = vmatpush.bf16.msra.mxu0 %v823
    %958 = vmatpush.bf16.msra.mxu0 %v818
    %959 = vmatmul.bf16.gmra.mxu0 %v413
    %v960 = vpop.f32.mrf.mxu0
    %v961 = vadd.f32 %v948, %v960
    %v962 = vpop.f32.mrf.mxu0
    %963 = vdwg.mxu0
    %964 = vmatpush.bf16.msra.mxu0 %v814
    %965 = vmatpush.bf16.msra.mxu0 %v809
    %966 = vmatpush.bf16.msra.mxu0 %v804
    %967 = vmatpush.bf16.msra.mxu0 %v799
    %968 = vmatpush.bf16.msra.mxu0 %v794
    %969 = vmatpush.bf16.msra.mxu0 %v789
    %970 = vmatpush.bf16.msra.mxu0 %v784
    %971 = vmatpush.bf16.msra.mxu0 %v779
    %972 = vmatmul.bf16.gmra.mxu0 %v412
    %v973 = vpop.f32.mrf.mxu0
    %v974 = vadd.f32 %v513, %v973
    %v975 = vpop.f32.mrf.mxu0
    %976 = vdwg.mxu0
    %977 = vmatpush.bf16.msra.mxu0 %v854
    %978 = vmatpush.bf16.msra.mxu0 %v849
    %979 = vmatpush.bf16.msra.mxu0 %v844
    %980 = vmatpush.bf16.msra.mxu0 %v839
    %981 = vmatpush.bf16.msra.mxu0 %v834
    %982 = vmatpush.bf16.msra.mxu0 %v829
    %983 = vmatpush.bf16.msra.mxu0 %v824
    %984 = vmatpush.bf16.msra.mxu0 %v819
    %985 = vmatmul.bf16.gmra.mxu0 %v413
    %v986 = vpop.f32.mrf.mxu0
    %v987 = vadd.f32 %v974, %v986
    %v988 = vpop.f32.mrf.mxu0
    %989 = vdwg.mxu0
    %990 = vmatpush.bf16.msra.mxu0 %v815
    %991 = vmatpush.bf16.msra.mxu0 %v810
    %992 = vmatpush.bf16.msra.mxu0 %v805
    %993 = vmatpush.bf16.msra.mxu0 %v800
    %994 = vmatpush.bf16.msra.mxu0 %v795
    %995 = vmatpush.bf16.msra.mxu0 %v790
    %996 = vmatpush.bf16.msra.mxu0 %v785
    %997 = vmatpush.bf16.msra.mxu0 %v780
    %998 = vmatmul.bf16.gmra.mxu0 %v412
    %v999 = vpop.f32.mrf.mxu0
    %v1000 = vadd.f32 %v514, %v999
    %v1001 = vpop.f32.mrf.mxu0
    %1002 = vdwg.mxu0
    %1003 = vmatpush.bf16.msra.mxu0 %v855
    %1004 = vmatpush.bf16.msra.mxu0 %v850
    %1005 = vmatpush.bf16.msra.mxu0 %v845
    %1006 = vmatpush.bf16.msra.mxu0 %v840
    %1007 = vmatpush.bf16.msra.mxu0 %v835
    %1008 = vmatpush.bf16.msra.mxu0 %v830
    %1009 = vmatpush.bf16.msra.mxu0 %v825
    %1010 = vmatpush.bf16.msra.mxu0 %v820
    %1011 = vmatmul.bf16.gmra.mxu0 %v413
    %v1012 = vpop.f32.mrf.mxu0
    %v1013 = vadd.f32 %v1000, %v1012
    %v1014 = vpop.f32.mrf.mxu0
    %1015 = vdwg.mxu0
    %1016 = vmatpush.bf16.msra.mxu0 %v816
    %1017 = vmatpush.bf16.msra.mxu0 %v811
    %1018 = vmatpush.bf16.msra.mxu0 %v806
    %1019 = vmatpush.bf16.msra.mxu0 %v801
    %1020 = vmatpush.bf16.msra.mxu0 %v796
    %1021 = vmatpush.bf16.msra.mxu0 %v791
    %1022 = vmatpush.bf16.msra.mxu0 %v786
    %1023 = vmatpush.bf16.msra.mxu0 %v781
    %1024 = vmatmul.bf16.gmra.mxu0 %v412
    %v1025 = vpop.f32.mrf.mxu0
    %v1026 = vadd.f32 %v515, %v1025
    %v1027 = vpop.f32.mrf.mxu0
    %1028 = vdwg.mxu0
    %1029 = vmatpush.bf16.msra.mxu0 %v856
    %1030 = vmatpush.bf16.msra.mxu0 %v851
    %1031 = vmatpush.bf16.msra.mxu0 %v846
    %1032 = vmatpush.bf16.msra.mxu0 %v841
    %1033 = vmatpush.bf16.msra.mxu0 %v836
    %1034 = vmatpush.bf16.msra.mxu0 %v831
    %1035 = vmatpush.bf16.msra.mxu0 %v826
    %1036 = vmatpush.bf16.msra.mxu0 %v821
    %1037 = vmatmul.bf16.gmra.mxu0 %v413
    %v1038 = vpop.f32.mrf.mxu0
    %v1039 = vadd.f32 %v1026, %v1038
    %v1040 = vpop.f32.mrf.mxu0
    %1041 = vdwg.mxu0
    %1042 = vmatpush.bf16.msra.mxu0 %v817
    %1043 = vmatpush.bf16.msra.mxu0 %v812
    %1044 = vmatpush.bf16.msra.mxu0 %v807
    %1045 = vmatpush.bf16.msra.mxu0 %v802
    %1046 = vmatpush.bf16.msra.mxu0 %v797
    %1047 = vmatpush.bf16.msra.mxu0 %v792
    %1048 = vmatpush.bf16.msra.mxu0 %v787
    %1049 = vmatpush.bf16.msra.mxu0 %v782
    %1050 = vmatmul.bf16.gmra.mxu0 %v412
    %v1051 = vpop.f32.mrf.mxu0
    %v1052 = vadd.f32 %v516, %v1051
    %v1053 = vpop.f32.mrf.mxu0
    %1054 = vdwg.mxu0
    %1055 = vmatpush.bf16.msra.mxu0 %v857
    %1056 = vmatpush.bf16.msra.mxu0 %v852
    %1057 = vmatpush.bf16.msra.mxu0 %v847
    %1058 = vmatpush.bf16.msra.mxu0 %v842
    %1059 = vmatpush.bf16.msra.mxu0 %v837
    %1060 = vmatpush.bf16.msra.mxu0 %v832
    %1061 = vmatpush.bf16.msra.mxu0 %v827
    %1062 = vmatpush.bf16.msra.mxu0 %v822
    %1063 = vmatmul.bf16.gmra.mxu0 %v413
    %v1064 = vpop.f32.mrf.mxu0
    %v1065 = vadd.f32 %v1052, %v1064
    %v1066 = vpop.f32.mrf.mxu0
    %1067 = vdwg.mxu0
    %v1068 = vtanh.pop %v961
    %v1069 = vtanh.pop %v987
    %v1070 = vtanh.pop %v1013
    %v1071 = vtanh.pop %v1039
    %v1072 = vtanh.pop %v1065
    %v1074 = vrot.slane %v1068, 1
    %1076 = vst [vmem:[%s5] sm:$0x1] %v1068
    %1077 = vst [vmem:[%s5 + $0x10] sm:$0x1] %v1074
    %v1079 = vrot.slane %v1069, 1
    %1081 = vst [vmem:[%s5 + $0x1] sm:$0x1] %v1069
    %1082 = vst [vmem:[%s5 + $0x11] sm:$0x1] %v1079
    %v1084 = vrot.slane %v1070, 1
    %1086 = vst [vmem:[%s5 + $0x2] sm:$0x1] %v1070
    %1087 = vst [vmem:[%s5 + $0x12] sm:$0x1] %v1084
    %v1089 = vrot.slane %v1071, 1
    %1091 = vst [vmem:[%s5 + $0x3] sm:$0x1] %v1071
    %1092 = vst [vmem:[%s5 + $0x13] sm:$0x1] %v1089
    %v1094 = vrot.slane %v1072, 1
    %1096 = vst [vmem:[%s5 + $0x4] sm:$0x1] %v1072
    %1097 = vst [vmem:[%s5 + $0x14] sm:$0x1] %v1094
    %s1098 = sld [smem:[#allocation5]]
    %s1099 = smul.u32 1, 1
    %s1100 = sshll.u32 %s1099, 4
    %1101 = dma.done [#allocation3], %s1100
    %s1102 = sld [smem:[#allocation5 + $0x1]]
    %s1103 = sshll.u32 %s1099, 4
    %1104 = dma.done %s85, %s1103
    %s1105 = sld [smem:[#allocation5 + $0x2]]
    %s1106 = sshll.u32 %s1099, 4
    %1107 = dma.done %s102, %s1106
    %s1108 = sld [smem:[#allocation5 + $0x3]]
    %s1109 = sshll.u32 %s1099, 4
    %1110 = dma.done %s119, %s1109
    %s1111 = sld [smem:[#allocation5 + $0x4]]
    %s1112 = sshll.u32 %s1099, 4
    %1113 = dma.done %s136, %s1112
    %s1114 = sld [smem:[#allocation5 + $0x5]]
    %s1115 = sshll.u32 %s1099, 4
    %1116 = dma.done %s153, %s1115
    %s1117 = sld [smem:[#allocation5 + $0x6]]
    %s1118 = sshll.u32 %s1099, 4
    %1119 = dma.done %s170, %s1118
    %s1120 = sld [smem:[#allocation5 + $0x7]]
    %s1121 = sshll.u32 %s1099, 4
    %1122 = dma.done %s187, %s1121
    %s1123 = sld [smem:[#allocation5 + $0x8]]
    %s1124 = sshll.u32 %s1099, 4
    %1125 = dma.done %s204, %s1124
    %s1126 = sld [smem:[#allocation5 + $0x9]]
    %s1127 = sshll.u32 %s1099, 4
    %1128 = dma.done %s221, %s1127
    %s1129 = sld [smem:[#allocation5 + $0xa]]
    %s1130 = sshll.u32 %s1099, 4
    %1131 = dma.done %s238, %s1130
    %s1132 = sld [smem:[#allocation5 + $0xb]]
    %s1133 = sshll.u32 %s1099, 4
    %1134 = dma.done %s255, %s1133
    %s1135 = sld [smem:[#allocation5 + $0xc]]
    %s1136 = sshll.u32 %s1099, 4
    %1137 = dma.done %s272, %s1136
    %s1138 = sld [smem:[#allocation5 + $0xd]]
    %s1139 = sshll.u32 %s1099, 4
    %1140 = dma.done %s289, %s1139
    %s1141 = sld [smem:[#allocation5 + $0xe]]
    %s1142 = sshll.u32 %s1099, 4
    %1143 = dma.done %s306, %s1142
    %s1144 = sld [smem:[#allocation5 + $0xf]]
    %s1145 = sshll.u32 %s1099, 4
    %1146 = dma.done %s323, %s1145
    %s1147 = sld [smem:[#allocation5 + $0x10]]
    %s1148 = sshll.u32 %s1099, 4
    %1149 = dma.done %s340, %s1148
    %s1150 = sld [smem:[#allocation5 + $0x11]]
    %s1151 = sshll.u32 %s1099, 4
    %1152 = dma.done %s357, %s1151
    %s1153 = sld [smem:[#allocation5 + $0x12]]
    %s1154 = sshll.u32 %s1099, 4
    %1155 = dma.done %s374, %s1154
    %s1156 = sld [smem:[#allocation5 + $0x13]]
    %s1157 = sshll.u32 %s1099, 4
    %1158 = dma.done %s391, %s1157
    %v1159 = vld [vmem:[#allocation2] sm:$0xff]
    %v1160 = vld [vmem:[#allocation2 + $0x8] sm:$0x3]
    %v1161 = vld [vmem:[#allocation2 + $0x10] sm:$0xff]
    %v1162 = vld [vmem:[#allocation2 + $0x18] sm:$0x3]
    %1163 = vst [vmem:[%s5 + $0x5] sm:$0xff] %v1159
    %1164 = vst [vmem:[%s5 + $0xd] sm:$0x3] %v1160
    %1165 = vst [vmem:[%s5 + $0x15] sm:$0xff] %v1161
    %1166 = vst [vmem:[%s5 + $0x1d] sm:$0x3] %v1162
    // Predicated region
    $region106: #{tpu_custom_call.1} parent=1 // pred_check
      _
    $region107: #{tpu_custom_call.1} parent=1 // pred_check_branch
      %1168 = sbr.rel (0) target = $region109
    $region108: #{tpu_custom_call.1} parent=1 // pred_region
      _
    $region109: #{tpu_custom_call.1} parent=1 // pred_fallthru
      _
    // Predicated region
    $region110: #{tpu_custom_call.1} parent=1 // pred_check
      _
    $region111: #{tpu_custom_call.1} parent=1 // pred_check_branch
      %1170 = sbr.rel (0) target = $region113
    $region112: #{tpu_custom_call.1} parent=1 // pred_region
      _
    $region113: #{tpu_custom_call.1} parent=1 // pred_fallthru
      _
    %1171 = vsyncpa [#allocation7], 1
    %1172 = vsyncpa [#allocation9], 1
  %1173 = vsyncmov [#allocation3]
  %s1174 = vpop.sfrf %1173
  %p1175 = scmp.eq.s32.totalorder %s1174, 0
  %p1176 = pneg %p1175
  %1178 = shalt.err (%p1176)
  %s1179 = scalar_lea.sflag [#allocation3], 1
  %1180 = vsyncmov %s1179
  %s1181 = vpop.sfrf %1180
  %p1182 = scmp.eq.s32.totalorder %s1181, 0
  %p1183 = pneg %p1182
  %1185 = shalt.err (%p1183)
  %s1186 = scalar_lea.sflag [#allocation3], 2
  %1187 = vsyncmov %s1186
  %s1188 = vpop.sfrf %1187
  %p1189 = scmp.eq.s32.totalorder %s1188, 0
  %p1190 = pneg %p1189
  %1192 = shalt.err (%p1190)
  %s1193 = scalar_lea.sflag [#allocation3], 3
  %1194 = vsyncmov %s1193
  %s1195 = vpop.sfrf %1194
  %p1196 = scmp.eq.s32.totalorder %s1195, 0
  %p1197 = pneg %p1196
  %1199 = shalt.err (%p1197)
  %s1200 = scalar_lea.sflag [#allocation3], 4
  %1201 = vsyncmov %s1200
  %s1202 = vpop.sfrf %1201
  %p1203 = scmp.eq.s32.totalorder %s1202, 0
  %p1204 = pneg %p1203
  %1206 = shalt.err (%p1204)
  %s1207 = scalar_lea.sflag [#allocation3], 5
  %1208 = vsyncmov %s1207
  %s1209 = vpop.sfrf %1208
  %p1210 = scmp.eq.s32.totalorder %s1209, 0
  %p1211 = pneg %p1210
  %1213 = shalt.err (%p1211)
  %s1214 = scalar_lea.sflag [#allocation3], 6
  %1215 = vsyncmov %s1214
  %s1216 = vpop.sfrf %1215
  %p1217 = scmp.eq.s32.totalorder %s1216, 0
  %p1218 = pneg %p1217
  %1220 = shalt.err (%p1218)
  %s1221 = scalar_lea.sflag [#allocation3], 7
  %1222 = vsyncmov %s1221
  %s1223 = vpop.sfrf %1222
  %p1224 = scmp.eq.s32.totalorder %s1223, 0
  %p1225 = pneg %p1224
  %1227 = shalt.err (%p1225)
  %s1228 = scalar_lea.sflag [#allocation3], 8
  %1229 = vsyncmov %s1228
  %s1230 = vpop.sfrf %1229
  %p1231 = scmp.eq.s32.totalorder %s1230, 0
  %p1232 = pneg %p1231
  %1234 = shalt.err (%p1232)
  %s1235 = scalar_lea.sflag [#allocation3], 9
  %1236 = vsyncmov %s1235
  %s1237 = vpop.sfrf %1236
  %p1238 = scmp.eq.s32.totalorder %s1237, 0
  %p1239 = pneg %p1238
  %1241 = shalt.err (%p1239)
  %s1242 = scalar_lea.sflag [#allocation3], 10
  %1243 = vsyncmov %s1242
  %s1244 = vpop.sfrf %1243
  %p1245 = scmp.eq.s32.totalorder %s1244, 0
  %p1246 = pneg %p1245
  %1248 = shalt.err (%p1246)
  %s1249 = scalar_lea.sflag [#allocation3], 11
  %1250 = vsyncmov %s1249
  %s1251 = vpop.sfrf %1250
  %p1252 = scmp.eq.s32.totalorder %s1251, 0
  %p1253 = pneg %p1252
  %1255 = shalt.err (%p1253)
  %s1256 = scalar_lea.sflag [#allocation3], 12
  %1257 = vsyncmov %s1256
  %s1258 = vpop.sfrf %1257
  %p1259 = scmp.eq.s32.totalorder %s1258, 0
  %p1260 = pneg %p1259
  %1262 = shalt.err (%p1260)
  %s1263 = scalar_lea.sflag [#allocation3], 13
  %1264 = vsyncmov %s1263
  %s1265 = vpop.sfrf %1264
  %p1266 = scmp.eq.s32.totalorder %s1265, 0
  %p1267 = pneg %p1266
  %1269 = shalt.err (%p1267)
  %s1270 = scalar_lea.sflag [#allocation3], 14
  %1271 = vsyncmov %s1270
  %s1272 = vpop.sfrf %1271
  %p1273 = scmp.eq.s32.totalorder %s1272, 0
  %p1274 = pneg %p1273
  %1276 = shalt.err (%p1274)
  %s1277 = scalar_lea.sflag [#allocation3], 15
  %1278 = vsyncmov %s1277
  %s1279 = vpop.sfrf %1278
  %p1280 = scmp.eq.s32.totalorder %s1279, 0
  %p1281 = pneg %p1280
  %1283 = shalt.err (%p1281)
  %s1284 = scalar_lea.sflag [#allocation3], 16
  %1285 = vsyncmov %s1284
  %s1286 = vpop.sfrf %1285
  %p1287 = scmp.eq.s32.totalorder %s1286, 0
  %p1288 = pneg %p1287
  %1290 = shalt.err (%p1288)
  %s1291 = scalar_lea.sflag [#allocation3], 17
  %1292 = vsyncmov %s1291
  %s1293 = vpop.sfrf %1292
  %p1294 = scmp.eq.s32.totalorder %s1293, 0
  %p1295 = pneg %p1294
  %1297 = shalt.err (%p1295)
  %s1298 = scalar_lea.sflag [#allocation3], 18
  %1299 = vsyncmov %s1298
  %s1300 = vpop.sfrf %1299
  %p1301 = scmp.eq.s32.totalorder %s1300, 0
  %p1302 = pneg %p1301
  %1304 = shalt.err (%p1302)
  %s1305 = scalar_lea.sflag [#allocation3], 19
  %1306 = vsyncmov %s1305
  %s1307 = vpop.sfrf %1306
  %p1308 = scmp.eq.s32.totalorder %s1307, 0
  %p1309 = pneg %p1308
  %1311 = shalt.err (%p1309)

</llo_original>
